<compile_context>
chip_gen: v7x
topology: tpu7x:2x2x1
jax: 0.10.0
libtpu: 0.0.40
codegen_flags: <defaults>
</compile_context>

<pallas_src>
import numpy as np
import jax
import jax.numpy as jnp
from jax.experimental import pallas as pl
from jax.experimental.pallas import tpu as pltpu


MXU_DTYPE = jnp.bfloat16   # MXU input dtype (accumulation stays f32); use jnp.float32 for exact-f32
BN_EPS = 1e-5
NEG_SLOPE = 0.01           # nn.LeakyReLU() default slope


# --------------------------- fused forward (1 pallas_call) -------------------

def hetero_gnn_forward(node_features, adjs, edge_label_index, params):
    """Entire HeteroGNN forward (encoder + dot-product decoder) in one kernel."""
    node_types = list(node_features.keys())
    message_types = list(adjs.keys())
    decoder_types = list(edge_label_index.keys())
    hidden = params["convs1"][message_types[0]]["M_dst"].shape[1]
    n_nodes = {nt: node_features[nt].shape[0] for nt in node_types}
    n_edges = {mt: edge_label_index[mt].shape[1] for mt in decoder_types}

    dst_mts = {nt: [mt for mt in message_types if mt[2] == nt] for nt in node_types}
    # The original module drops node types that never receive messages; keep
    # that case explicit instead of silently diverging.
    assert all(dst_mts[nt] for nt in node_types), \
        "every node type must be the dst of at least one message type"

    # ---- flatten pre-cast / pre-folded operands into one input list ---------
    inputs = []

    def push(a):
        inputs.append(a)
        return len(inputs) - 1

    x_ix = {nt: push(node_features[nt].astype(MXU_DTYPE)) for nt in node_types}
    adj_ix = {mt: push(adjs[mt].astype(MXU_DTYPE)) for mt in message_types}

    def push_folded(conv_params):
        # Fold the cross-message-type mean into the weights (exact algebra).
        ix = {"M_dst": {}, "b": {}, "M_src": {}}
        for nt in node_types:
            mts = dst_mts[nt]
            k = float(len(mts))
            M_dst = sum(conv_params[mt]["M_dst"] for mt in mts) / k
            b = sum(conv_params[mt]["b_eff"] for mt in mts) / k
            ix["M_dst"][nt] = push(M_dst.astype(MXU_DTYPE))
            ix["b"][nt] = push(b.astype(jnp.float32))
            for mt in mts:
                ix["M_src"][mt] = push((conv_params[mt]["M_src"] / k).astype(MXU_DTYPE))
        return ix

    c1_ix = push_folded(params["convs1"])
    bn_ix = {nt: (push(params["bns1"][nt]["gamma"].astype(jnp.float32)),
                  push(params["bns1"][nt]["beta"].astype(jnp.float32)))
             for nt in node_types}
    c2_ix = push_folded(params["convs2"])
    n_in = len(inputs)

    # Decoder edge indices -> one flat int32 vector, scalar-prefetched to SMEM.
    # Layout per decoder type: [src_0..src_{E-1}, trg_0..trg_{E-1}].
    eidx_flat = jnp.concatenate(
        [edge_label_index[mt].astype(jnp.int32).reshape(-1) for mt in decoder_types])
    e_total = int(sum(n_edges.values()))
    out_width = max(128, -(-e_total // 128) * 128)       # lane-dense, 128-padded

    def bn_leaky(x, gamma, beta):
        # BatchNorm1d training-mode batch stats (single pass), affine folded to
        # one scale/shift, then LeakyReLU(0.01).
        # TODO(synk): E[x^2]-E[x]^2 is cancellation-prone when |mean| >> std;
        #   use a centered / Welford form for production activations.
        inv_n = 1.0 / x.shape[0]                          # compile-time constant
        s = jnp.sum(x, axis=0, keepdims=True)
        ss = jnp.sum(x * x, axis=0, keepdims=True)
        mean = s * inv_n
        var = jnp.maximum(ss * inv_n - mean * mean, 0.0)  # biased var (PyTorch fwd)
        scale = gamma * jax.lax.rsqrt(var + BN_EPS)       # EUP rsqrt
        shift = beta - mean * scale
        y = x * scale + shift
        return jnp.where(y >= 0, y, NEG_SLOPE * y)

    def kernel(eidx_ref, *refs):
        in_refs = refs[:n_in]
        out_ref = refs[n_in]
        z_ref = {nt: refs[n_in + 1 + t] for t, nt in enumerate(node_types)}
        pbuf = refs[n_in + 1 + len(node_types)]           # (out_width, hidden) f32
        get = lambda i: in_refs[i][...]

        def layer(feats_mxu, fix):
            out = {}
            for nt in node_types:
                acc = jnp.dot(feats_mxu[nt], get(fix["M_dst"][nt]),
                              preferred_element_type=jnp.float32)
                for mt in dst_mts[nt]:
                    aggr = jnp.dot(get(adj_ix[mt]), feats_mxu[mt[0]],
                                   preferred_element_type=jnp.float32)
                    acc = acc + jnp.dot(aggr.astype(MXU_DTYPE),
                                        get(fix["M_src"][mt]),
                                        preferred_element_type=jnp.float32)
                out[nt] = acc + get(fix["b"][nt])
            return out

        # conv1 (+ folded cross-message mean) -> BatchNorm + LeakyReLU
        h = layer({nt: get(x_ix[nt]) for nt in node_types}, c1_ix)
        h = {nt: bn_leaky(h[nt], get(bn_ix[nt][0]), get(bn_ix[nt][1]))
             for nt in node_types}
        # conv2 (+ folded cross-message mean); cast activations once per type
        z = layer({nt: h[nt].astype(MXU_DTYPE) for nt in node_types}, c2_ix)
        for nt in node_types:
            z_ref[nt][...] = z[nt]

        # dot-product decoder (pred_mode='all'):
        # SMEM-indexed dynamic-slice row gathers from the VMEM scratch, per-edge
        # elementwise product into a padded (out_width, H) buffer, then one XLU
        # lane reduction and a single lane-dense (1, out_width) store.
        pbuf[...] = jnp.zeros((out_width, hidden), jnp.float32)
        row = 0
        ptr = 0
        for mt in decoder_types:
            src_t, _, trg_t = mt
            e_mt = n_edges[mt]
            for e in range(e_mt):
                si = eidx_ref[ptr + e]                     # scalar from SMEM
                ti = eidx_ref[ptr + e_mt + e]
                rs = z_ref[src_t][pl.ds(si, 1), :]         # (1, H) dynamic row
                rt = z_ref[trg_t][pl.ds(ti, 1), :]
                pbuf[pl.ds(row, 1), :] = rs * rt
                row += 1
            ptr += 2 * e_mt
        out_ref[...] = jnp.sum(pbuf[...], axis=-1).reshape(1, out_width)

    # Whole-array blocks: this toy problem fits in VMEM many times over, so one
    # fused invocation avoids HBM round-trips for every intermediate.  See the
    # module-level TODOs for the tiled / sparse / multi-TensorCore scaling path.
    in_specs = [pl.BlockSpec(a.shape, lambda i, eidx, nd=a.ndim: (0,) * nd)
                for a in inputs]
    out_shape = jax.ShapeDtypeStruct((1, out_width), jnp.float32)
    out_spec = pl.BlockSpec((1, out_width), lambda i, eidx: (0, 0))

    grid_spec = pltpu.PrefetchScalarGridSpec(
        num_scalar_prefetch=1,
        grid=(1,),
        in_specs=in_specs,
        out_specs=out_spec,
        scratch_shapes=(
            [pltpu.VMEM((n_nodes[nt], hidden), jnp.float32) for nt in node_types]
            + [pltpu.VMEM((out_width, hidden), jnp.float32)]),
    )

    out = pl.pallas_call(
        kernel,
        grid_spec=grid_spec,
        out_shape=out_shape,
        compiler_params=pltpu.CompilerParams(
            dimension_semantics=("arbitrary",),
            vmem_limit_bytes=32 * 1024 * 1024),  # explicit; re-sweep per generation
    )(eidx_flat, *inputs)

    pred = {}
    off = 0
    for mt in decoder_types:
        pred[mt] = out[0, off:off + n_edges[mt]]
        off += n_edges[mt]
    return pred


# ------------------------------ parameter init -------------------------------

def init_linear(key, in_dim, out_dim):
    k_w, k_b = jax.random.split(key)
    bound = 1.0 / np.sqrt(in_dim)
    W = jax.random.uniform(k_w, (in_dim, out_dim), jnp.float32, -bound, bound)
    b = jax.random.uniform(k_b, (1, out_dim), jnp.float32, -bound, bound)
    return W, b


def init_conv(key, in_src, in_dst, hidden):
    k1, k2, k3 = jax.random.split(key, 3)
    W_dst, b_dst = init_linear(k1, in_dst, hidden)
    W_src, b_src = init_linear(k2, in_src, hidden)
    W_upd, b_upd = init_linear(k3, 2 * hidden, hidden)
    # Fold lin_update into lin_dst / lin_src (exact algebra):
    #   lin_update(concat(lin_dst(x_dst), lin_src(aggr)))
    #     == x_dst @ (W_dst @ W_upd[:H]) + aggr @ (W_src @ W_upd[H:])
    #        + (b_dst @ W_upd[:H] + b_src @ W_upd[H:] + b_upd)
    M_dst = W_dst @ W_upd[:hidden]
    M_src = W_src @ W_upd[hidden:]
    b_eff = b_dst @ W_upd[:hidden] + b_src @ W_upd[hidden:] + b_upd
    return {"M_dst": M_dst, "M_src": M_src, "b_eff": b_eff}


def build_norm_adj(src_idx, dst_idx, n_src, n_dst):
    # Dense row-normalized adjacency so A @ x_src == torch_sparse.matmul(adj,
    # x_src, reduce='mean'); .add keeps duplicate-edge multiplicity.
    A = jnp.zeros((n_dst, n_src), jnp.float32)
    A = A.at[dst_idx, src_idx].add(1.0)
    deg = jnp.sum(A, axis=1, keepdims=True)
    return A / jnp.maximum(deg, 1.0)


# ----------------------------------- main ------------------------------------

if __name__ == "__main__":
    key = jax.random.PRNGKey(0)
    hidden_size = 32

    node_types = {"gene_protein": (16, 12), "disease": (8, 6)}  # (num_nodes, feat_dim)
    message_types = [
        ("gene_protein", "gda", "disease"),
        ("disease", "gda", "gene_protein"),
        ("gene_protein", "interacts", "gene_protein"),
    ]

    # node features
    node_features = {}
    for nt, (n, f) in node_types.items():
        key, sub = jax.random.split(key)
        node_features[nt] = jax.random.normal(sub, (n, f), jnp.float32)

    # message-passing edges -> dense row-normalized adjacencies (mean aggregation)
    adjs = {}
    n_msg_edges = 24
    for mt in message_types:
        src_t, _, dst_t = mt
        n_src, n_dst = node_types[src_t][0], node_types[dst_t][0]
        key, k1, k2 = jax.random.split(key, 3)
        src_idx = jax.random.randint(k1, (n_msg_edges,), 0, n_src)
        dst_idx = jax.random.randint(k2, (n_msg_edges,), 0, n_dst)
        adjs[mt] = build_norm_adj(src_idx, dst_idx, n_src, n_dst)

    # supervision edges for the dot-product decoder
    edge_label_index = {}
    n_label_edges = 10
    for mt in [("gene_protein", "gda", "disease"), ("disease", "gda", "gene_protein")]:
        src_t, _, dst_t = mt
        key, k1, k2 = jax.random.split(key, 3)
        edge_label_index[mt] = jnp.stack([
            jax.random.randint(k1, (n_label_edges,), 0, node_types[src_t][0]),
            jax.random.randint(k2, (n_label_edges,), 0, node_types[dst_t][0]),
        ], axis=0)

    # deterministic parameter init (mirrors module __init__ shapes)
    params = {"convs1": {}, "convs2": {}, "bns1": {}}
    for mt in message_types:
        src_t, _, dst_t = mt
        key, k1, k2 = jax.random.split(key, 3)
        params["convs1"][mt] = init_conv(
            k1, node_types[src_t][1], node_types[dst_t][1], hidden_size)
        params["convs2"][mt] = init_conv(k2, hidden_size, hidden_size, hidden_size)
    for nt in node_types:
        params["bns1"][nt] = {"gamma": jnp.ones((1, hidden_size), jnp.float32),
                              "beta": jnp.zeros((1, hidden_size), jnp.float32)}

    pred = hetero_gnn_forward(node_features, adjs, edge_label_index, params)
    jax.block_until_ready(pred)
    print("KERNEL_OK")
</pallas_src>

<mosaic_0001>
module attributes {stable_mosaic.version = 11 : i64} {
  func.func @kernel(%arg0: i32, %arg1: memref<40xi32, #tpu.memory_space<smem>>, %arg2: memref<16x12xbf16, #tpu.memory_space<vmem>>, %arg3: memref<8x6xbf16, #tpu.memory_space<vmem>>, %arg4: memref<8x16xbf16, #tpu.memory_space<vmem>>, %arg5: memref<16x8xbf16, #tpu.memory_space<vmem>>, %arg6: memref<16x16xbf16, #tpu.memory_space<vmem>>, %arg7: memref<12x32xbf16, #tpu.memory_space<vmem>>, %arg8: memref<1x32xf32, #tpu.memory_space<vmem>>, %arg9: memref<6x32xbf16, #tpu.memory_space<vmem>>, %arg10: memref<12x32xbf16, #tpu.memory_space<vmem>>, %arg11: memref<6x32xbf16, #tpu.memory_space<vmem>>, %arg12: memref<1x32xf32, #tpu.memory_space<vmem>>, %arg13: memref<12x32xbf16, #tpu.memory_space<vmem>>, %arg14: memref<1x32xf32, #tpu.memory_space<vmem>>, %arg15: memref<1x32xf32, #tpu.memory_space<vmem>>, %arg16: memref<1x32xf32, #tpu.memory_space<vmem>>, %arg17: memref<1x32xf32, #tpu.memory_space<vmem>>, %arg18: memref<32x32xbf16, #tpu.memory_space<vmem>>, %arg19: memref<1x32xf32, #tpu.memory_space<vmem>>, %arg20: memref<32x32xbf16, #tpu.memory_space<vmem>>, %arg21: memref<32x32xbf16, #tpu.memory_space<vmem>>, %arg22: memref<32x32xbf16, #tpu.memory_space<vmem>>, %arg23: memref<1x32xf32, #tpu.memory_space<vmem>>, %arg24: memref<32x32xbf16, #tpu.memory_space<vmem>>, %arg25: memref<1x128xf32, #tpu.memory_space<vmem>>, %arg26: memref<16x32xf32, #tpu.memory_space<vmem>>, %arg27: memref<8x32xf32, #tpu.memory_space<vmem>>, %arg28: memref<128x32xf32, #tpu.memory_space<vmem>>) attributes {dimension_semantics = [#tpu.dimension_semantics<arbitrary>], iteration_bounds = array<i64: 1>, scalar_prefetch = 1 : i64, scratch_operands = 3 : i64, tpu.core_type = #tpu.core_type<tc>, window_params = [{pipeline_mode = #tpu.pipeline_mode<synchronous>, transform_indices = @transform_0, window_bounds = array<i64: 16, 12>}, {pipeline_mode = #tpu.pipeline_mode<synchronous>, transform_indices = @transform_1, window_bounds = array<i64: 8, 6>}, {pipeline_mode = #tpu.pipeline_mode<synchronous>, transform_indices = @transform_2, window_bounds = array<i64: 8, 16>}, {pipeline_mode = #tpu.pipeline_mode<synchronous>, transform_indices = @transform_3, window_bounds = array<i64: 16, 8>}, {pipeline_mode = #tpu.pipeline_mode<synchronous>, transform_indices = @transform_4, window_bounds = array<i64: 16, 16>}, {pipeline_mode = #tpu.pipeline_mode<synchronous>, transform_indices = @transform_5, window_bounds = array<i64: 12, 32>}, {pipeline_mode = #tpu.pipeline_mode<synchronous>, transform_indices = @transform_6, window_bounds = array<i64: 1, 32>}, {pipeline_mode = #tpu.pipeline_mode<synchronous>, transform_indices = @transform_7, window_bounds = array<i64: 6, 32>}, {pipeline_mode = #tpu.pipeline_mode<synchronous>, transform_indices = @transform_8, window_bounds = array<i64: 12, 32>}, {pipeline_mode = #tpu.pipeline_mode<synchronous>, transform_indices = @transform_9, window_bounds = array<i64: 6, 32>}, {pipeline_mode = #tpu.pipeline_mode<synchronous>, transform_indices = @transform_10, window_bounds = array<i64: 1, 32>}, {pipeline_mode = #tpu.pipeline_mode<synchronous>, transform_indices = @transform_11, window_bounds = array<i64: 12, 32>}, {pipeline_mode = #tpu.pipeline_mode<synchronous>, transform_indices = @transform_12, window_bounds = array<i64: 1, 32>}, {pipeline_mode = #tpu.pipeline_mode<synchronous>, transform_indices = @transform_13, window_bounds = array<i64: 1, 32>}, {pipeline_mode = #tpu.pipeline_mode<synchronous>, transform_indices = @transform_14, window_bounds = array<i64: 1, 32>}, {pipeline_mode = #tpu.pipeline_mode<synchronous>, transform_indices = @transform_15, window_bounds = array<i64: 1, 32>}, {pipeline_mode = #tpu.pipeline_mode<synchronous>, transform_indices = @transform_16, window_bounds = array<i64: 32, 32>}, {pipeline_mode = #tpu.pipeline_mode<synchronous>, transform_indices = @transform_17, window_bounds = array<i64: 1, 32>}, {pipeline_mode = #tpu.pipeline_mode<synchronous>, transform_indices = @transform_18, window_bounds = array<i64: 32, 32>}, {pipeline_mode = #tpu.pipeline_mode<synchronous>, transform_indices = @transform_19, window_bounds = array<i64: 32, 32>}, {pipeline_mode = #tpu.pipeline_mode<synchronous>, transform_indices = @transform_20, window_bounds = array<i64: 32, 32>}, {pipeline_mode = #tpu.pipeline_mode<synchronous>, transform_indices = @transform_21, window_bounds = array<i64: 1, 32>}, {pipeline_mode = #tpu.pipeline_mode<synchronous>, transform_indices = @transform_22, window_bounds = array<i64: 32, 32>}, {pipeline_mode = #tpu.pipeline_mode<synchronous>, transform_indices = @transform_23, window_bounds = array<i64: 1, 128>}]} {
    %c0 = arith.constant 0 : index
    %c0_0 = arith.constant 0 : index
    %0 = vector.load %arg2[%c0, %c0_0] : memref<16x12xbf16, #tpu.memory_space<vmem>>, vector<16x12xbf16>
    %c0_1 = arith.constant 0 : index
    %c0_2 = arith.constant 0 : index
    %1 = vector.load %arg3[%c0_1, %c0_2] : memref<8x6xbf16, #tpu.memory_space<vmem>>, vector<8x6xbf16>
    %c0_3 = arith.constant 0 : index
    %c0_4 = arith.constant 0 : index
    %2 = vector.load %arg7[%c0_3, %c0_4] : memref<12x32xbf16, #tpu.memory_space<vmem>>, vector<12x32xbf16>
    %cst = arith.constant dense<0.000000e+00> : vector<16x32xf32>
    %3 = tpu.matmul %0, %2, %cst {dimension_numbers = #tpu.dot_dimension_numbers<[1], [0], [0], [1], [0, 0, 1, 1], [], []>} : vector<16x12xbf16>, vector<12x32xbf16>, vector<16x32xf32> -> vector<16x32xf32>
    %c0_5 = arith.constant 0 : index
    %c0_6 = arith.constant 0 : index
    %4 = vector.load %arg5[%c0_5, %c0_6] : memref<16x8xbf16, #tpu.memory_space<vmem>>, vector<16x8xbf16>
    %cst_7 = arith.constant dense<0.000000e+00> : vector<16x6xf32>
    %5 = tpu.matmul %4, %1, %cst_7 {dimension_numbers = #tpu.dot_dimension_numbers<[1], [0], [0], [1], [0, 0, 1, 1], [], []>} : vector<16x8xbf16>, vector<8x6xbf16>, vector<16x6xf32> -> vector<16x6xf32>
    %6 = arith.truncf %5 : vector<16x6xf32> to vector<16x6xbf16>
    %c0_8 = arith.constant 0 : index
    %c0_9 = arith.constant 0 : index
    %7 = vector.load %arg9[%c0_8, %c0_9] : memref<6x32xbf16, #tpu.memory_space<vmem>>, vector<6x32xbf16>
    %cst_10 = arith.constant dense<0.000000e+00> : vector<16x32xf32>
    %8 = tpu.matmul %6, %7, %cst_10 {dimension_numbers = #tpu.dot_dimension_numbers<[1], [0], [0], [1], [0, 0, 1, 1], [], []>} : vector<16x6xbf16>, vector<6x32xbf16>, vector<16x32xf32> -> vector<16x32xf32>
    %9 = arith.addf %3, %8 : vector<16x32xf32>
    %c0_11 = arith.constant 0 : index
    %c0_12 = arith.constant 0 : index
    %10 = vector.load %arg6[%c0_11, %c0_12] : memref<16x16xbf16, #tpu.memory_space<vmem>>, vector<16x16xbf16>
    %cst_13 = arith.constant dense<0.000000e+00> : vector<16x12xf32>
    %11 = tpu.matmul %10, %0, %cst_13 {dimension_numbers = #tpu.dot_dimension_numbers<[1], [0], [0], [1], [0, 0, 1, 1], [], []>} : vector<16x16xbf16>, vector<16x12xbf16>, vector<16x12xf32> -> vector<16x12xf32>
    %12 = arith.truncf %11 : vector<16x12xf32> to vector<16x12xbf16>
    %c0_14 = arith.constant 0 : index
    %c0_15 = arith.constant 0 : index
    %13 = vector.load %arg10[%c0_14, %c0_15] : memref<12x32xbf16, #tpu.memory_space<vmem>>, vector<12x32xbf16>
    %cst_16 = arith.constant dense<0.000000e+00> : vector<16x32xf32>
    %14 = tpu.matmul %12, %13, %cst_16 {dimension_numbers = #tpu.dot_dimension_numbers<[1], [0], [0], [1], [0, 0, 1, 1], [], []>} : vector<16x12xbf16>, vector<12x32xbf16>, vector<16x32xf32> -> vector<16x32xf32>
    %15 = arith.addf %9, %14 : vector<16x32xf32>
    %c0_17 = arith.constant 0 : index
    %c0_18 = arith.constant 0 : index
    %16 = vector.load %arg8[%c0_17, %c0_18] : memref<1x32xf32, #tpu.memory_space<vmem>>, vector<1x32xf32>
    %17 = vector.broadcast %16 : vector<1x32xf32> to vector<16x32xf32>
    %18 = arith.addf %15, %17 : vector<16x32xf32>
    %c0_19 = arith.constant 0 : index
    %c0_20 = arith.constant 0 : index
    %19 = vector.load %arg11[%c0_19, %c0_20] : memref<6x32xbf16, #tpu.memory_space<vmem>>, vector<6x32xbf16>
    %cst_21 = arith.constant dense<0.000000e+00> : vector<8x32xf32>
    %20 = tpu.matmul %1, %19, %cst_21 {dimension_numbers = #tpu.dot_dimension_numbers<[1], [0], [0], [1], [0, 0, 1, 1], [], []>} : vector<8x6xbf16>, vector<6x32xbf16>, vector<8x32xf32> -> vector<8x32xf32>
    %c0_22 = arith.constant 0 : index
    %c0_23 = arith.constant 0 : index
    %21 = vector.load %arg4[%c0_22, %c0_23] : memref<8x16xbf16, #tpu.memory_space<vmem>>, vector<8x16xbf16>
    %cst_24 = arith.constant dense<0.000000e+00> : vector<8x12xf32>
    %22 = tpu.matmul %21, %0, %cst_24 {dimension_numbers = #tpu.dot_dimension_numbers<[1], [0], [0], [1], [0, 0, 1, 1], [], []>} : vector<8x16xbf16>, vector<16x12xbf16>, vector<8x12xf32> -> vector<8x12xf32>
    %23 = arith.truncf %22 : vector<8x12xf32> to vector<8x12xbf16>
    %c0_25 = arith.constant 0 : index
    %c0_26 = arith.constant 0 : index
    %24 = vector.load %arg13[%c0_25, %c0_26] : memref<12x32xbf16, #tpu.memory_space<vmem>>, vector<12x32xbf16>
    %cst_27 = arith.constant dense<0.000000e+00> : vector<8x32xf32>
    %25 = tpu.matmul %23, %24, %cst_27 {dimension_numbers = #tpu.dot_dimension_numbers<[1], [0], [0], [1], [0, 0, 1, 1], [], []>} : vector<8x12xbf16>, vector<12x32xbf16>, vector<8x32xf32> -> vector<8x32xf32>
    %26 = arith.addf %20, %25 : vector<8x32xf32>
    %c0_28 = arith.constant 0 : index
    %c0_29 = arith.constant 0 : index
    %27 = vector.load %arg12[%c0_28, %c0_29] : memref<1x32xf32, #tpu.memory_space<vmem>>, vector<1x32xf32>
    %28 = vector.broadcast %27 : vector<1x32xf32> to vector<8x32xf32>
    %29 = arith.addf %26, %28 : vector<8x32xf32>
    %c0_30 = arith.constant 0 : index
    %c0_31 = arith.constant 0 : index
    %30 = vector.load %arg14[%c0_30, %c0_31] : memref<1x32xf32, #tpu.memory_space<vmem>>, vector<1x32xf32>
    %c0_32 = arith.constant 0 : index
    %c0_33 = arith.constant 0 : index
    %31 = vector.load %arg15[%c0_32, %c0_33] : memref<1x32xf32, #tpu.memory_space<vmem>>, vector<1x32xf32>
    %cst_34 = arith.constant dense<0.000000e+00> : vector<32xf32>
    %32 = vector.multi_reduction <add>, %18, %cst_34 [0] : vector<16x32xf32> to vector<32xf32>
    %33 = vector.shape_cast %32 : vector<32xf32> to vector<1x32xf32>
    %34 = arith.mulf %18, %18 : vector<16x32xf32>
    %cst_35 = arith.constant dense<0.000000e+00> : vector<32xf32>
    %35 = vector.multi_reduction <add>, %34, %cst_35 [0] : vector<16x32xf32> to vector<32xf32>
    %36 = vector.shape_cast %35 : vector<32xf32> to vector<1x32xf32>
    %cst_36 = arith.constant 6.250000e-02 : f32
    %37 = vector.broadcast %cst_36 : f32 to vector<1x32xf32>
    %38 = arith.mulf %33, %37 : vector<1x32xf32>
    %cst_37 = arith.constant 6.250000e-02 : f32
    %39 = vector.broadcast %cst_37 : f32 to vector<1x32xf32>
    %40 = arith.mulf %36, %39 : vector<1x32xf32>
    %41 = arith.mulf %38, %38 : vector<1x32xf32>
    %42 = arith.subf %40, %41 : vector<1x32xf32>
    %cst_38 = arith.constant 0.000000e+00 : f32
    %43 = vector.broadcast %cst_38 : f32 to vector<1x32xf32>
    %44 = arith.maximumf %42, %43 : vector<1x32xf32>
    %cst_39 = arith.constant 9.99999974E-6 : f32
    %45 = vector.broadcast %cst_39 : f32 to vector<1x32xf32>
    %46 = arith.addf %44, %45 : vector<1x32xf32>
    %47 = math.rsqrt %46 : vector<1x32xf32>
    %48 = arith.mulf %30, %47 : vector<1x32xf32>
    %49 = arith.mulf %38, %48 : vector<1x32xf32>
    %50 = arith.subf %31, %49 : vector<1x32xf32>
    %51 = vector.broadcast %48 : vector<1x32xf32> to vector<16x32xf32>
    %52 = arith.mulf %18, %51 : vector<16x32xf32>
    %53 = vector.broadcast %50 : vector<1x32xf32> to vector<16x32xf32>
    %54 = arith.addf %52, %53 : vector<16x32xf32>
    %cst_40 = arith.constant 0.000000e+00 : f32
    %55 = vector.broadcast %cst_40 : f32 to vector<16x32xf32>
    %56 = arith.cmpf oge, %54, %55 : vector<16x32xf32>
    %cst_41 = arith.constant 0.00999999977 : f32
    %57 = vector.broadcast %cst_41 : f32 to vector<16x32xf32>
    %58 = arith.mulf %57, %54 : vector<16x32xf32>
    %59 = arith.select %56, %54, %58 : vector<16x32xi1>, vector<16x32xf32>
    %c0_42 = arith.constant 0 : index
    %c0_43 = arith.constant 0 : index
    %60 = vector.load %arg16[%c0_42, %c0_43] : memref<1x32xf32, #tpu.memory_space<vmem>>, vector<1x32xf32>
    %c0_44 = arith.constant 0 : index
    %c0_45 = arith.constant 0 : index
    %61 = vector.load %arg17[%c0_44, %c0_45] : memref<1x32xf32, #tpu.memory_space<vmem>>, vector<1x32xf32>
    %cst_46 = arith.constant dense<0.000000e+00> : vector<32xf32>
    %62 = vector.multi_reduction <add>, %29, %cst_46 [0] : vector<8x32xf32> to vector<32xf32>
    %63 = vector.shape_cast %62 : vector<32xf32> to vector<1x32xf32>
    %64 = arith.mulf %29, %29 : vector<8x32xf32>
    %cst_47 = arith.constant dense<0.000000e+00> : vector<32xf32>
    %65 = vector.multi_reduction <add>, %64, %cst_47 [0] : vector<8x32xf32> to vector<32xf32>
    %66 = vector.shape_cast %65 : vector<32xf32> to vector<1x32xf32>
    %cst_48 = arith.constant 1.250000e-01 : f32
    %67 = vector.broadcast %cst_48 : f32 to vector<1x32xf32>
    %68 = arith.mulf %63, %67 : vector<1x32xf32>
    %cst_49 = arith.constant 1.250000e-01 : f32
    %69 = vector.broadcast %cst_49 : f32 to vector<1x32xf32>
    %70 = arith.mulf %66, %69 : vector<1x32xf32>
    %71 = arith.mulf %68, %68 : vector<1x32xf32>
    %72 = arith.subf %70, %71 : vector<1x32xf32>
    %cst_50 = arith.constant 0.000000e+00 : f32
    %73 = vector.broadcast %cst_50 : f32 to vector<1x32xf32>
    %74 = arith.maximumf %72, %73 : vector<1x32xf32>
    %cst_51 = arith.constant 9.99999974E-6 : f32
    %75 = vector.broadcast %cst_51 : f32 to vector<1x32xf32>
    %76 = arith.addf %74, %75 : vector<1x32xf32>
    %77 = math.rsqrt %76 : vector<1x32xf32>
    %78 = arith.mulf %60, %77 : vector<1x32xf32>
    %79 = arith.mulf %68, %78 : vector<1x32xf32>
    %80 = arith.subf %61, %79 : vector<1x32xf32>
    %81 = vector.broadcast %78 : vector<1x32xf32> to vector<8x32xf32>
    %82 = arith.mulf %29, %81 : vector<8x32xf32>
    %83 = vector.broadcast %80 : vector<1x32xf32> to vector<8x32xf32>
    %84 = arith.addf %82, %83 : vector<8x32xf32>
    %cst_52 = arith.constant 0.000000e+00 : f32
    %85 = vector.broadcast %cst_52 : f32 to vector<8x32xf32>
    %86 = arith.cmpf oge, %84, %85 : vector<8x32xf32>
    %cst_53 = arith.constant 0.00999999977 : f32
    %87 = vector.broadcast %cst_53 : f32 to vector<8x32xf32>
    %88 = arith.mulf %87, %84 : vector<8x32xf32>
    %89 = arith.select %86, %84, %88 : vector<8x32xi1>, vector<8x32xf32>
    %90 = arith.truncf %59 : vector<16x32xf32> to vector<16x32xbf16>
    %91 = arith.truncf %89 : vector<8x32xf32> to vector<8x32xbf16>
    %c0_54 = arith.constant 0 : index
    %c0_55 = arith.constant 0 : index
    %92 = vector.load %arg18[%c0_54, %c0_55] : memref<32x32xbf16, #tpu.memory_space<vmem>>, vector<32x32xbf16>
    %cst_56 = arith.constant dense<0.000000e+00> : vector<16x32xf32>
    %93 = tpu.matmul %90, %92, %cst_56 {dimension_numbers = #tpu.dot_dimension_numbers<[1], [0], [0], [1], [0, 0, 1, 1], [], []>} : vector<16x32xbf16>, vector<32x32xbf16>, vector<16x32xf32> -> vector<16x32xf32>
    %c0_57 = arith.constant 0 : index
    %c0_58 = arith.constant 0 : index
    %94 = vector.load %arg5[%c0_57, %c0_58] : memref<16x8xbf16, #tpu.memory_space<vmem>>, vector<16x8xbf16>
    %cst_59 = arith.constant dense<0.000000e+00> : vector<16x32xf32>
    %95 = tpu.matmul %94, %91, %cst_59 {dimension_numbers = #tpu.dot_dimension_numbers<[1], [0], [0], [1], [0, 0, 1, 1], [], []>} : vector<16x8xbf16>, vector<8x32xbf16>, vector<16x32xf32> -> vector<16x32xf32>
    %96 = arith.truncf %95 : vector<16x32xf32> to vector<16x32xbf16>
    %c0_60 = arith.constant 0 : index
    %c0_61 = arith.constant 0 : index
    %97 = vector.load %arg20[%c0_60, %c0_61] : memref<32x32xbf16, #tpu.memory_space<vmem>>, vector<32x32xbf16>
    %cst_62 = arith.constant dense<0.000000e+00> : vector<16x32xf32>
    %98 = tpu.matmul %96, %97, %cst_62 {dimension_numbers = #tpu.dot_dimension_numbers<[1], [0], [0], [1], [0, 0, 1, 1], [], []>} : vector<16x32xbf16>, vector<32x32xbf16>, vector<16x32xf32> -> vector<16x32xf32>
    %99 = arith.addf %93, %98 : vector<16x32xf32>
    %c0_63 = arith.constant 0 : index
    %c0_64 = arith.constant 0 : index
    %100 = vector.load %arg6[%c0_63, %c0_64] : memref<16x16xbf16, #tpu.memory_space<vmem>>, vector<16x16xbf16>
    %cst_65 = arith.constant dense<0.000000e+00> : vector<16x32xf32>
    %101 = tpu.matmul %100, %90, %cst_65 {dimension_numbers = #tpu.dot_dimension_numbers<[1], [0], [0], [1], [0, 0, 1, 1], [], []>} : vector<16x16xbf16>, vector<16x32xbf16>, vector<16x32xf32> -> vector<16x32xf32>
    %102 = arith.truncf %101 : vector<16x32xf32> to vector<16x32xbf16>
    %c0_66 = arith.constant 0 : index
    %c0_67 = arith.constant 0 : index
    %103 = vector.load %arg21[%c0_66, %c0_67] : memref<32x32xbf16, #tpu.memory_space<vmem>>, vector<32x32xbf16>
    %cst_68 = arith.constant dense<0.000000e+00> : vector<16x32xf32>
    %104 = tpu.matmul %102, %103, %cst_68 {dimension_numbers = #tpu.dot_dimension_numbers<[1], [0], [0], [1], [0, 0, 1, 1], [], []>} : vector<16x32xbf16>, vector<32x32xbf16>, vector<16x32xf32> -> vector<16x32xf32>
    %105 = arith.addf %99, %104 : vector<16x32xf32>
    %c0_69 = arith.constant 0 : index
    %c0_70 = arith.constant 0 : index
    %106 = vector.load %arg19[%c0_69, %c0_70] : memref<1x32xf32, #tpu.memory_space<vmem>>, vector<1x32xf32>
    %107 = vector.broadcast %106 : vector<1x32xf32> to vector<16x32xf32>
    %108 = arith.addf %105, %107 : vector<16x32xf32>
    %c0_71 = arith.constant 0 : index
    %c0_72 = arith.constant 0 : index
    %109 = vector.load %arg22[%c0_71, %c0_72] : memref<32x32xbf16, #tpu.memory_space<vmem>>, vector<32x32xbf16>
    %cst_73 = arith.constant dense<0.000000e+00> : vector<8x32xf32>
    %110 = tpu.matmul %91, %109, %cst_73 {dimension_numbers = #tpu.dot_dimension_numbers<[1], [0], [0], [1], [0, 0, 1, 1], [], []>} : vector<8x32xbf16>, vector<32x32xbf16>, vector<8x32xf32> -> vector<8x32xf32>
    %c0_74 = arith.constant 0 : index
    %c0_75 = arith.constant 0 : index
    %111 = vector.load %arg4[%c0_74, %c0_75] : memref<8x16xbf16, #tpu.memory_space<vmem>>, vector<8x16xbf16>
    %cst_76 = arith.constant dense<0.000000e+00> : vector<8x32xf32>
    %112 = tpu.matmul %111, %90, %cst_76 {dimension_numbers = #tpu.dot_dimension_numbers<[1], [0], [0], [1], [0, 0, 1, 1], [], []>} : vector<8x16xbf16>, vector<16x32xbf16>, vector<8x32xf32> -> vector<8x32xf32>
    %113 = arith.truncf %112 : vector<8x32xf32> to vector<8x32xbf16>
    %c0_77 = arith.constant 0 : index
    %c0_78 = arith.constant 0 : index
    %114 = vector.load %arg24[%c0_77, %c0_78] : memref<32x32xbf16, #tpu.memory_space<vmem>>, vector<32x32xbf16>
    %cst_79 = arith.constant dense<0.000000e+00> : vector<8x32xf32>
    %115 = tpu.matmul %113, %114, %cst_79 {dimension_numbers = #tpu.dot_dimension_numbers<[1], [0], [0], [1], [0, 0, 1, 1], [], []>} : vector<8x32xbf16>, vector<32x32xbf16>, vector<8x32xf32> -> vector<8x32xf32>
    %116 = arith.addf %110, %115 : vector<8x32xf32>
    %c0_80 = arith.constant 0 : index
    %c0_81 = arith.constant 0 : index
    %117 = vector.load %arg23[%c0_80, %c0_81] : memref<1x32xf32, #tpu.memory_space<vmem>>, vector<1x32xf32>
    %118 = vector.broadcast %117 : vector<1x32xf32> to vector<8x32xf32>
    %119 = arith.addf %116, %118 : vector<8x32xf32>
    %c0_82 = arith.constant 0 : index
    %c0_83 = arith.constant 0 : index
    %120 = vector.load %arg26[%c0_82, %c0_83] : memref<16x32xf32, #tpu.memory_space<vmem>>, vector<16x32xf32>
    tpu.vector_store %arg26[%c0_82, %c0_83], %108 {strides = array<i32>} : memref<16x32xf32, #tpu.memory_space<vmem>>, vector<16x32xf32>,
    %c0_84 = arith.constant 0 : index
    %c0_85 = arith.constant 0 : index
    %121 = vector.load %arg27[%c0_84, %c0_85] : memref<8x32xf32, #tpu.memory_space<vmem>>, vector<8x32xf32>
    tpu.vector_store %arg27[%c0_84, %c0_85], %119 {strides = array<i32>} : memref<8x32xf32, #tpu.memory_space<vmem>>, vector<8x32xf32>,
    %cst_86 = arith.constant 0.000000e+00 : f32
    %122 = vector.broadcast %cst_86 : f32 to vector<128x32xf32>
    %c0_87 = arith.constant 0 : index
    %c0_88 = arith.constant 0 : index
    %123 = vector.load %arg28[%c0_87, %c0_88] : memref<128x32xf32, #tpu.memory_space<vmem>>, vector<128x32xf32>
    tpu.vector_store %arg28[%c0_87, %c0_88], %122 {strides = array<i32>} : memref<128x32xf32, #tpu.memory_space<vmem>>, vector<128x32xf32>,
    %c0_89 = arith.constant 0 : index
    %124 = memref.load %arg1[%c0_89] : memref<40xi32, #tpu.memory_space<smem>>
    %c10 = arith.constant 10 : index
    %125 = memref.load %arg1[%c10] : memref<40xi32, #tpu.memory_space<smem>>
    %126 = arith.index_cast %124 : i32 to index
    %c0_90 = arith.constant 0 : index
    %127 = vector.load %arg26[%126, %c0_90] : memref<16x32xf32, #tpu.memory_space<vmem>>, vector<1x32xf32>
    %128 = arith.index_cast %125 : i32 to index
    %c0_91 = arith.constant 0 : index
    %129 = vector.load %arg27[%128, %c0_91] : memref<8x32xf32, #tpu.memory_space<vmem>>, vector<1x32xf32>
    %130 = arith.mulf %127, %129 : vector<1x32xf32>
    %c0_92 = arith.constant 0 : index
    %c0_93 = arith.constant 0 : index
    %131 = vector.load %arg28[%c0_92, %c0_93] : memref<128x32xf32, #tpu.memory_space<vmem>>, vector<1x32xf32>
    tpu.vector_store %arg28[%c0_92, %c0_93], %130 {strides = array<i32>} : memref<128x32xf32, #tpu.memory_space<vmem>>, vector<1x32xf32>,
    %c1 = arith.constant 1 : index
    %132 = memref.load %arg1[%c1] : memref<40xi32, #tpu.memory_space<smem>>
    %c11 = arith.constant 11 : index
    %133 = memref.load %arg1[%c11] : memref<40xi32, #tpu.memory_space<smem>>
    %134 = arith.index_cast %132 : i32 to index
    %c0_94 = arith.constant 0 : index
    %135 = vector.load %arg26[%134, %c0_94] : memref<16x32xf32, #tpu.memory_space<vmem>>, vector<1x32xf32>
    %136 = arith.index_cast %133 : i32 to index
    %c0_95 = arith.constant 0 : index
    %137 = vector.load %arg27[%136, %c0_95] : memref<8x32xf32, #tpu.memory_space<vmem>>, vector<1x32xf32>
    %138 = arith.mulf %135, %137 : vector<1x32xf32>
    %c1_96 = arith.constant 1 : index
    %c0_97 = arith.constant 0 : index
    %139 = vector.load %arg28[%c1_96, %c0_97] : memref<128x32xf32, #tpu.memory_space<vmem>>, vector<1x32xf32>
    tpu.vector_store %arg28[%c1_96, %c0_97], %138 {strides = array<i32>} : memref<128x32xf32, #tpu.memory_space<vmem>>, vector<1x32xf32>,
    %c2 = arith.constant 2 : index
    %140 = memref.load %arg1[%c2] : memref<40xi32, #tpu.memory_space<smem>>
    %c12 = arith.constant 12 : index
    %141 = memref.load %arg1[%c12] : memref<40xi32, #tpu.memory_space<smem>>
    %142 = arith.index_cast %140 : i32 to index
    %c0_98 = arith.constant 0 : index
    %143 = vector.load %arg26[%142, %c0_98] : memref<16x32xf32, #tpu.memory_space<vmem>>, vector<1x32xf32>
    %144 = arith.index_cast %141 : i32 to index
    %c0_99 = arith.constant 0 : index
    %145 = vector.load %arg27[%144, %c0_99] : memref<8x32xf32, #tpu.memory_space<vmem>>, vector<1x32xf32>
    %146 = arith.mulf %143, %145 : vector<1x32xf32>
    %c2_100 = arith.constant 2 : index
    %c0_101 = arith.constant 0 : index
    %147 = vector.load %arg28[%c2_100, %c0_101] : memref<128x32xf32, #tpu.memory_space<vmem>>, vector<1x32xf32>
    tpu.vector_store %arg28[%c2_100, %c0_101], %146 {strides = array<i32>} : memref<128x32xf32, #tpu.memory_space<vmem>>, vector<1x32xf32>,
    %c3 = arith.constant 3 : index
    %148 = memref.load %arg1[%c3] : memref<40xi32, #tpu.memory_space<smem>>
    %c13 = arith.constant 13 : index
    %149 = memref.load %arg1[%c13] : memref<40xi32, #tpu.memory_space<smem>>
    %150 = arith.index_cast %148 : i32 to index
    %c0_102 = arith.constant 0 : index
    %151 = vector.load %arg26[%150, %c0_102] : memref<16x32xf32, #tpu.memory_space<vmem>>, vector<1x32xf32>
    %152 = arith.index_cast %149 : i32 to index
    %c0_103 = arith.constant 0 : index
    %153 = vector.load %arg27[%152, %c0_103] : memref<8x32xf32, #tpu.memory_space<vmem>>, vector<1x32xf32>
    %154 = arith.mulf %151, %153 : vector<1x32xf32>
    %c3_104 = arith.constant 3 : index
    %c0_105 = arith.constant 0 : index
    %155 = vector.load %arg28[%c3_104, %c0_105] : memref<128x32xf32, #tpu.memory_space<vmem>>, vector<1x32xf32>
    tpu.vector_store %arg28[%c3_104, %c0_105], %154 {strides = array<i32>} : memref<128x32xf32, #tpu.memory_space<vmem>>, vector<1x32xf32>,
    %c4 = arith.constant 4 : index
    %156 = memref.load %arg1[%c4] : memref<40xi32, #tpu.memory_space<smem>>
    %c14 = arith.constant 14 : index
    %157 = memref.load %arg1[%c14] : memref<40xi32, #tpu.memory_space<smem>>
    %158 = arith.index_cast %156 : i32 to index
    %c0_106 = arith.constant 0 : index
    %159 = vector.load %arg26[%158, %c0_106] : memref<16x32xf32, #tpu.memory_space<vmem>>, vector<1x32xf32>
    %160 = arith.index_cast %157 : i32 to index
    %c0_107 = arith.constant 0 : index
    %161 = vector.load %arg27[%160, %c0_107] : memref<8x32xf32, #tpu.memory_space<vmem>>, vector<1x32xf32>
    %162 = arith.mulf %159, %161 : vector<1x32xf32>
    %c4_108 = arith.constant 4 : index
    %c0_109 = arith.constant 0 : index
    %163 = vector.load %arg28[%c4_108, %c0_109] : memref<128x32xf32, #tpu.memory_space<vmem>>, vector<1x32xf32>
    tpu.vector_store %arg28[%c4_108, %c0_109], %162 {strides = array<i32>} : memref<128x32xf32, #tpu.memory_space<vmem>>, vector<1x32xf32>,
    %c5 = arith.constant 5 : index
    %164 = memref.load %arg1[%c5] : memref<40xi32, #tpu.memory_space<smem>>
    %c15 = arith.constant 15 : index
    %165 = memref.load %arg1[%c15] : memref<40xi32, #tpu.memory_space<smem>>
    %166 = arith.index_cast %164 : i32 to index
    %c0_110 = arith.constant 0 : index
    %167 = vector.load %arg26[%166, %c0_110] : memref<16x32xf32, #tpu.memory_space<vmem>>, vector<1x32xf32>
    %168 = arith.index_cast %165 : i32 to index
    %c0_111 = arith.constant 0 : index
    %169 = vector.load %arg27[%168, %c0_111] : memref<8x32xf32, #tpu.memory_space<vmem>>, vector<1x32xf32>
    %170 = arith.mulf %167, %169 : vector<1x32xf32>
    %c5_112 = arith.constant 5 : index
    %c0_113 = arith.constant 0 : index
    %171 = vector.load %arg28[%c5_112, %c0_113] : memref<128x32xf32, #tpu.memory_space<vmem>>, vector<1x32xf32>
    tpu.vector_store %arg28[%c5_112, %c0_113], %170 {strides = array<i32>} : memref<128x32xf32, #tpu.memory_space<vmem>>, vector<1x32xf32>,
    %c6 = arith.constant 6 : index
    %172 = memref.load %arg1[%c6] : memref<40xi32, #tpu.memory_space<smem>>
    %c16 = arith.constant 16 : index
    %173 = memref.load %arg1[%c16] : memref<40xi32, #tpu.memory_space<smem>>
    %174 = arith.index_cast %172 : i32 to index
    %c0_114 = arith.constant 0 : index
    %175 = vector.load %arg26[%174, %c0_114] : memref<16x32xf32, #tpu.memory_space<vmem>>, vector<1x32xf32>
    %176 = arith.index_cast %173 : i32 to index
    %c0_115 = arith.constant 0 : index
    %177 = vector.load %arg27[%176, %c0_115] : memref<8x32xf32, #tpu.memory_space<vmem>>, vector<1x32xf32>
    %178 = arith.mulf %175, %177 : vector<1x32xf32>
    %c6_116 = arith.constant 6 : index
    %c0_117 = arith.constant 0 : index
    %179 = vector.load %arg28[%c6_116, %c0_117] : memref<128x32xf32, #tpu.memory_space<vmem>>, vector<1x32xf32>
    tpu.vector_store %arg28[%c6_116, %c0_117], %178 {strides = array<i32>} : memref<128x32xf32, #tpu.memory_space<vmem>>, vector<1x32xf32>,
    %c7 = arith.constant 7 : index
    %180 = memref.load %arg1[%c7] : memref<40xi32, #tpu.memory_space<smem>>
    %c17 = arith.constant 17 : index
    %181 = memref.load %arg1[%c17] : memref<40xi32, #tpu.memory_space<smem>>
    %182 = arith.index_cast %180 : i32 to index
    %c0_118 = arith.constant 0 : index
    %183 = vector.load %arg26[%182, %c0_118] : memref<16x32xf32, #tpu.memory_space<vmem>>, vector<1x32xf32>
    %184 = arith.index_cast %181 : i32 to index
    %c0_119 = arith.constant 0 : index
    %185 = vector.load %arg27[%184, %c0_119] : memref<8x32xf32, #tpu.memory_space<vmem>>, vector<1x32xf32>
    %186 = arith.mulf %183, %185 : vector<1x32xf32>
    %c7_120 = arith.constant 7 : index
    %c0_121 = arith.constant 0 : index
    %187 = vector.load %arg28[%c7_120, %c0_121] : memref<128x32xf32, #tpu.memory_space<vmem>>, vector<1x32xf32>
    tpu.vector_store %arg28[%c7_120, %c0_121], %186 {strides = array<i32>} : memref<128x32xf32, #tpu.memory_space<vmem>>, vector<1x32xf32>,
    %c8 = arith.constant 8 : index
    %188 = memref.load %arg1[%c8] : memref<40xi32, #tpu.memory_space<smem>>
    %c18 = arith.constant 18 : index
    %189 = memref.load %arg1[%c18] : memref<40xi32, #tpu.memory_space<smem>>
    %190 = arith.index_cast %188 : i32 to index
    %c0_122 = arith.constant 0 : index
    %191 = vector.load %arg26[%190, %c0_122] : memref<16x32xf32, #tpu.memory_space<vmem>>, vector<1x32xf32>
    %192 = arith.index_cast %189 : i32 to index
    %c0_123 = arith.constant 0 : index
    %193 = vector.load %arg27[%192, %c0_123] : memref<8x32xf32, #tpu.memory_space<vmem>>, vector<1x32xf32>
    %194 = arith.mulf %191, %193 : vector<1x32xf32>
    %c8_124 = arith.constant 8 : index
    %c0_125 = arith.constant 0 : index
    %195 = vector.load %arg28[%c8_124, %c0_125] : memref<128x32xf32, #tpu.memory_space<vmem>>, vector<1x32xf32>
    tpu.vector_store %arg28[%c8_124, %c0_125], %194 {strides = array<i32>} : memref<128x32xf32, #tpu.memory_space<vmem>>, vector<1x32xf32>,
    %c9 = arith.constant 9 : index
    %196 = memref.load %arg1[%c9] : memref<40xi32, #tpu.memory_space<smem>>
    %c19 = arith.constant 19 : index
    %197 = memref.load %arg1[%c19] : memref<40xi32, #tpu.memory_space<smem>>
    %198 = arith.index_cast %196 : i32 to index
    %c0_126 = arith.constant 0 : index
    %199 = vector.load %arg26[%198, %c0_126] : memref<16x32xf32, #tpu.memory_space<vmem>>, vector<1x32xf32>
    %200 = arith.index_cast %197 : i32 to index
    %c0_127 = arith.constant 0 : index
    %201 = vector.load %arg27[%200, %c0_127] : memref<8x32xf32, #tpu.memory_space<vmem>>, vector<1x32xf32>
    %202 = arith.mulf %199, %201 : vector<1x32xf32>
    %c9_128 = arith.constant 9 : index
    %c0_129 = arith.constant 0 : index
    %203 = vector.load %arg28[%c9_128, %c0_129] : memref<128x32xf32, #tpu.memory_space<vmem>>, vector<1x32xf32>
    tpu.vector_store %arg28[%c9_128, %c0_129], %202 {strides = array<i32>} : memref<128x32xf32, #tpu.memory_space<vmem>>, vector<1x32xf32>,
    %c20 = arith.constant 20 : index
    %204 = memref.load %arg1[%c20] : memref<40xi32, #tpu.memory_space<smem>>
    %c30 = arith.constant 30 : index
    %205 = memref.load %arg1[%c30] : memref<40xi32, #tpu.memory_space<smem>>
    %206 = arith.index_cast %204 : i32 to index
    %c0_130 = arith.constant 0 : index
    %207 = vector.load %arg27[%206, %c0_130] : memref<8x32xf32, #tpu.memory_space<vmem>>, vector<1x32xf32>
    %208 = arith.index_cast %205 : i32 to index
    %c0_131 = arith.constant 0 : index
    %209 = vector.load %arg26[%208, %c0_131] : memref<16x32xf32, #tpu.memory_space<vmem>>, vector<1x32xf32>
    %210 = arith.mulf %207, %209 : vector<1x32xf32>
    %c10_132 = arith.constant 10 : index
    %c0_133 = arith.constant 0 : index
    %211 = vector.load %arg28[%c10_132, %c0_133] : memref<128x32xf32, #tpu.memory_space<vmem>>, vector<1x32xf32>
    tpu.vector_store %arg28[%c10_132, %c0_133], %210 {strides = array<i32>} : memref<128x32xf32, #tpu.memory_space<vmem>>, vector<1x32xf32>,
    %c21 = arith.constant 21 : index
    %212 = memref.load %arg1[%c21] : memref<40xi32, #tpu.memory_space<smem>>
    %c31 = arith.constant 31 : index
    %213 = memref.load %arg1[%c31] : memref<40xi32, #tpu.memory_space<smem>>
    %214 = arith.index_cast %212 : i32 to index
    %c0_134 = arith.constant 0 : index
    %215 = vector.load %arg27[%214, %c0_134] : memref<8x32xf32, #tpu.memory_space<vmem>>, vector<1x32xf32>
    %216 = arith.index_cast %213 : i32 to index
    %c0_135 = arith.constant 0 : index
    %217 = vector.load %arg26[%216, %c0_135] : memref<16x32xf32, #tpu.memory_space<vmem>>, vector<1x32xf32>
    %218 = arith.mulf %215, %217 : vector<1x32xf32>
    %c11_136 = arith.constant 11 : index
    %c0_137 = arith.constant 0 : index
    %219 = vector.load %arg28[%c11_136, %c0_137] : memref<128x32xf32, #tpu.memory_space<vmem>>, vector<1x32xf32>
    tpu.vector_store %arg28[%c11_136, %c0_137], %218 {strides = array<i32>} : memref<128x32xf32, #tpu.memory_space<vmem>>, vector<1x32xf32>,
    %c22 = arith.constant 22 : index
    %220 = memref.load %arg1[%c22] : memref<40xi32, #tpu.memory_space<smem>>
    %c32 = arith.constant 32 : index
    %221 = memref.load %arg1[%c32] : memref<40xi32, #tpu.memory_space<smem>>
    %222 = arith.index_cast %220 : i32 to index
    %c0_138 = arith.constant 0 : index
    %223 = vector.load %arg27[%222, %c0_138] : memref<8x32xf32, #tpu.memory_space<vmem>>, vector<1x32xf32>
    %224 = arith.index_cast %221 : i32 to index
    %c0_139 = arith.constant 0 : index
    %225 = vector.load %arg26[%224, %c0_139] : memref<16x32xf32, #tpu.memory_space<vmem>>, vector<1x32xf32>
    %226 = arith.mulf %223, %225 : vector<1x32xf32>
    %c12_140 = arith.constant 12 : index
    %c0_141 = arith.constant 0 : index
    %227 = vector.load %arg28[%c12_140, %c0_141] : memref<128x32xf32, #tpu.memory_space<vmem>>, vector<1x32xf32>
    tpu.vector_store %arg28[%c12_140, %c0_141], %226 {strides = array<i32>} : memref<128x32xf32, #tpu.memory_space<vmem>>, vector<1x32xf32>,
    %c23 = arith.constant 23 : index
    %228 = memref.load %arg1[%c23] : memref<40xi32, #tpu.memory_space<smem>>
    %c33 = arith.constant 33 : index
    %229 = memref.load %arg1[%c33] : memref<40xi32, #tpu.memory_space<smem>>
    %230 = arith.index_cast %228 : i32 to index
    %c0_142 = arith.constant 0 : index
    %231 = vector.load %arg27[%230, %c0_142] : memref<8x32xf32, #tpu.memory_space<vmem>>, vector<1x32xf32>
    %232 = arith.index_cast %229 : i32 to index
    %c0_143 = arith.constant 0 : index
    %233 = vector.load %arg26[%232, %c0_143] : memref<16x32xf32, #tpu.memory_space<vmem>>, vector<1x32xf32>
    %234 = arith.mulf %231, %233 : vector<1x32xf32>
    %c13_144 = arith.constant 13 : index
    %c0_145 = arith.constant 0 : index
    %235 = vector.load %arg28[%c13_144, %c0_145] : memref<128x32xf32, #tpu.memory_space<vmem>>, vector<1x32xf32>
    tpu.vector_store %arg28[%c13_144, %c0_145], %234 {strides = array<i32>} : memref<128x32xf32, #tpu.memory_space<vmem>>, vector<1x32xf32>,
    %c24 = arith.constant 24 : index
    %236 = memref.load %arg1[%c24] : memref<40xi32, #tpu.memory_space<smem>>
    %c34 = arith.constant 34 : index
    %237 = memref.load %arg1[%c34] : memref<40xi32, #tpu.memory_space<smem>>
    %238 = arith.index_cast %236 : i32 to index
    %c0_146 = arith.constant 0 : index
    %239 = vector.load %arg27[%238, %c0_146] : memref<8x32xf32, #tpu.memory_space<vmem>>, vector<1x32xf32>
    %240 = arith.index_cast %237 : i32 to index
    %c0_147 = arith.constant 0 : index
    %241 = vector.load %arg26[%240, %c0_147] : memref<16x32xf32, #tpu.memory_space<vmem>>, vector<1x32xf32>
    %242 = arith.mulf %239, %241 : vector<1x32xf32>
    %c14_148 = arith.constant 14 : index
    %c0_149 = arith.constant 0 : index
    %243 = vector.load %arg28[%c14_148, %c0_149] : memref<128x32xf32, #tpu.memory_space<vmem>>, vector<1x32xf32>
    tpu.vector_store %arg28[%c14_148, %c0_149], %242 {strides = array<i32>} : memref<128x32xf32, #tpu.memory_space<vmem>>, vector<1x32xf32>,
    %c25 = arith.constant 25 : index
    %244 = memref.load %arg1[%c25] : memref<40xi32, #tpu.memory_space<smem>>
    %c35 = arith.constant 35 : index
    %245 = memref.load %arg1[%c35] : memref<40xi32, #tpu.memory_space<smem>>
    %246 = arith.index_cast %244 : i32 to index
    %c0_150 = arith.constant 0 : index
    %247 = vector.load %arg27[%246, %c0_150] : memref<8x32xf32, #tpu.memory_space<vmem>>, vector<1x32xf32>
    %248 = arith.index_cast %245 : i32 to index
    %c0_151 = arith.constant 0 : index
    %249 = vector.load %arg26[%248, %c0_151] : memref<16x32xf32, #tpu.memory_space<vmem>>, vector<1x32xf32>
    %250 = arith.mulf %247, %249 : vector<1x32xf32>
    %c15_152 = arith.constant 15 : index
    %c0_153 = arith.constant 0 : index
    %251 = vector.load %arg28[%c15_152, %c0_153] : memref<128x32xf32, #tpu.memory_space<vmem>>, vector<1x32xf32>
    tpu.vector_store %arg28[%c15_152, %c0_153], %250 {strides = array<i32>} : memref<128x32xf32, #tpu.memory_space<vmem>>, vector<1x32xf32>,
    %c26 = arith.constant 26 : index
    %252 = memref.load %arg1[%c26] : memref<40xi32, #tpu.memory_space<smem>>
    %c36 = arith.constant 36 : index
    %253 = memref.load %arg1[%c36] : memref<40xi32, #tpu.memory_space<smem>>
    %254 = arith.index_cast %252 : i32 to index
    %c0_154 = arith.constant 0 : index
    %255 = vector.load %arg27[%254, %c0_154] : memref<8x32xf32, #tpu.memory_space<vmem>>, vector<1x32xf32>
    %256 = arith.index_cast %253 : i32 to index
    %c0_155 = arith.constant 0 : index
    %257 = vector.load %arg26[%256, %c0_155] : memref<16x32xf32, #tpu.memory_space<vmem>>, vector<1x32xf32>
    %258 = arith.mulf %255, %257 : vector<1x32xf32>
    %c16_156 = arith.constant 16 : index
    %c0_157 = arith.constant 0 : index
    %259 = vector.load %arg28[%c16_156, %c0_157] : memref<128x32xf32, #tpu.memory_space<vmem>>, vector<1x32xf32>
    tpu.vector_store %arg28[%c16_156, %c0_157], %258 {strides = array<i32>} : memref<128x32xf32, #tpu.memory_space<vmem>>, vector<1x32xf32>,
    %c27 = arith.constant 27 : index
    %260 = memref.load %arg1[%c27] : memref<40xi32, #tpu.memory_space<smem>>
    %c37 = arith.constant 37 : index
    %261 = memref.load %arg1[%c37] : memref<40xi32, #tpu.memory_space<smem>>
    %262 = arith.index_cast %260 : i32 to index
    %c0_158 = arith.constant 0 : index
    %263 = vector.load %arg27[%262, %c0_158] : memref<8x32xf32, #tpu.memory_space<vmem>>, vector<1x32xf32>
    %264 = arith.index_cast %261 : i32 to index
    %c0_159 = arith.constant 0 : index
    %265 = vector.load %arg26[%264, %c0_159] : memref<16x32xf32, #tpu.memory_space<vmem>>, vector<1x32xf32>
    %266 = arith.mulf %263, %265 : vector<1x32xf32>
    %c17_160 = arith.constant 17 : index
    %c0_161 = arith.constant 0 : index
    %267 = vector.load %arg28[%c17_160, %c0_161] : memref<128x32xf32, #tpu.memory_space<vmem>>, vector<1x32xf32>
    tpu.vector_store %arg28[%c17_160, %c0_161], %266 {strides = array<i32>} : memref<128x32xf32, #tpu.memory_space<vmem>>, vector<1x32xf32>,
    %c28 = arith.constant 28 : index
    %268 = memref.load %arg1[%c28] : memref<40xi32, #tpu.memory_space<smem>>
    %c38 = arith.constant 38 : index
    %269 = memref.load %arg1[%c38] : memref<40xi32, #tpu.memory_space<smem>>
    %270 = arith.index_cast %268 : i32 to index
    %c0_162 = arith.constant 0 : index
    %271 = vector.load %arg27[%270, %c0_162] : memref<8x32xf32, #tpu.memory_space<vmem>>, vector<1x32xf32>
    %272 = arith.index_cast %269 : i32 to index
    %c0_163 = arith.constant 0 : index
    %273 = vector.load %arg26[%272, %c0_163] : memref<16x32xf32, #tpu.memory_space<vmem>>, vector<1x32xf32>
    %274 = arith.mulf %271, %273 : vector<1x32xf32>
    %c18_164 = arith.constant 18 : index
    %c0_165 = arith.constant 0 : index
    %275 = vector.load %arg28[%c18_164, %c0_165] : memref<128x32xf32, #tpu.memory_space<vmem>>, vector<1x32xf32>
    tpu.vector_store %arg28[%c18_164, %c0_165], %274 {strides = array<i32>} : memref<128x32xf32, #tpu.memory_space<vmem>>, vector<1x32xf32>,
    %c29 = arith.constant 29 : index
    %276 = memref.load %arg1[%c29] : memref<40xi32, #tpu.memory_space<smem>>
    %c39 = arith.constant 39 : index
    %277 = memref.load %arg1[%c39] : memref<40xi32, #tpu.memory_space<smem>>
    %278 = arith.index_cast %276 : i32 to index
    %c0_166 = arith.constant 0 : index
    %279 = vector.load %arg27[%278, %c0_166] : memref<8x32xf32, #tpu.memory_space<vmem>>, vector<1x32xf32>
    %280 = arith.index_cast %277 : i32 to index
    %c0_167 = arith.constant 0 : index
    %281 = vector.load %arg26[%280, %c0_167] : memref<16x32xf32, #tpu.memory_space<vmem>>, vector<1x32xf32>
    %282 = arith.mulf %279, %281 : vector<1x32xf32>
    %c19_168 = arith.constant 19 : index
    %c0_169 = arith.constant 0 : index
    %283 = vector.load %arg28[%c19_168, %c0_169] : memref<128x32xf32, #tpu.memory_space<vmem>>, vector<1x32xf32>
    tpu.vector_store %arg28[%c19_168, %c0_169], %282 {strides = array<i32>} : memref<128x32xf32, #tpu.memory_space<vmem>>, vector<1x32xf32>,
    %c0_170 = arith.constant 0 : index
    %c0_171 = arith.constant 0 : index
    %284 = vector.load %arg28[%c0_170, %c0_171] : memref<128x32xf32, #tpu.memory_space<vmem>>, vector<128x32xf32>
    %cst_172 = arith.constant dense<0.000000e+00> : vector<128xf32>
    %285 = vector.multi_reduction <add>, %284, %cst_172 [1] : vector<128x32xf32> to vector<128xf32>
    %286 = vector.shape_cast %285 : vector<128xf32> to vector<1x128xf32>
    %c0_173 = arith.constant 0 : index
    %c0_174 = arith.constant 0 : index
    %287 = vector.load %arg25[%c0_173, %c0_174] : memref<1x128xf32, #tpu.memory_space<vmem>>, vector<1x128xf32>
    tpu.vector_store %arg25[%c0_173, %c0_174], %286 {strides = array<i32>} : memref<1x128xf32, #tpu.memory_space<vmem>>, vector<1x128xf32>,
    return
  }
  func.func @transform_0(%arg0: i32, %arg1: memref<40xi32, #tpu.memory_space<smem>>) -> (i32, i32) {
    %c0_i32 = arith.constant 0 : i32
    %c0_i32_0 = arith.constant 0 : i32
    %c0_i32_1 = arith.constant 0 : i32
    return %c0_i32, %c0_i32_0 : i32, i32
  }
  func.func @transform_1(%arg0: i32, %arg1: memref<40xi32, #tpu.memory_space<smem>>) -> (i32, i32) {
    %c0_i32 = arith.constant 0 : i32
    %c0_i32_0 = arith.constant 0 : i32
    %c0_i32_1 = arith.constant 0 : i32
    return %c0_i32, %c0_i32_0 : i32, i32
  }
  func.func @transform_2(%arg0: i32, %arg1: memref<40xi32, #tpu.memory_space<smem>>) -> (i32, i32) {
    %c0_i32 = arith.constant 0 : i32
    %c0_i32_0 = arith.constant 0 : i32
    %c0_i32_1 = arith.constant 0 : i32
    return %c0_i32, %c0_i32_0 : i32, i32
  }
  func.func @transform_3(%arg0: i32, %arg1: memref<40xi32, #tpu.memory_space<smem>>) -> (i32, i32) {
    %c0_i32 = arith.constant 0 : i32
    %c0_i32_0 = arith.constant 0 : i32
    %c0_i32_1 = arith.constant 0 : i32
    return %c0_i32, %c0_i32_0 : i32, i32
  }
  func.func @transform_4(%arg0: i32, %arg1: memref<40xi32, #tpu.memory_space<smem>>) -> (i32, i32) {
    %c0_i32 = arith.constant 0 : i32
    %c0_i32_0 = arith.constant 0 : i32
    %c0_i32_1 = arith.constant 0 : i32
    return %c0_i32, %c0_i32_0 : i32, i32
  }
  func.func @transform_5(%arg0: i32, %arg1: memref<40xi32, #tpu.memory_space<smem>>) -> (i32, i32) {
    %c0_i32 = arith.constant 0 : i32
    %c0_i32_0 = arith.constant 0 : i32
    %c0_i32_1 = arith.constant 0 : i32
    return %c0_i32, %c0_i32_0 : i32, i32
  }
  func.func @transform_6(%arg0: i32, %arg1: memref<40xi32, #tpu.memory_space<smem>>) -> (i32, i32) {
    %c0_i32 = arith.constant 0 : i32
    %c0_i32_0 = arith.constant 0 : i32
    %c0_i32_1 = arith.constant 0 : i32
    return %c0_i32, %c0_i32_0 : i32, i32
  }
  func.func @transform_7(%arg0: i32, %arg1: memref<40xi32, #tpu.memory_space<smem>>) -> (i32, i32) {
    %c0_i32 = arith.constant 0 : i32
    %c0_i32_0 = arith.constant 0 : i32
    %c0_i32_1 = arith.constant 0 : i32
    return %c0_i32, %c0_i32_0 : i32, i32
  }
  func.func @transform_8(%arg0: i32, %arg1: memref<40xi32, #tpu.memory_space<smem>>) -> (i32, i32) {
    %c0_i32 = arith.constant 0 : i32
    %c0_i32_0 = arith.constant 0 : i32
    %c0_i32_1 = arith.constant 0 : i32
    return %c0_i32, %c0_i32_0 : i32, i32
  }
  func.func @transform_9(%arg0: i32, %arg1: memref<40xi32, #tpu.memory_space<smem>>) -> (i32, i32) {
    %c0_i32 = arith.constant 0 : i32
    %c0_i32_0 = arith.constant 0 : i32
    %c0_i32_1 = arith.constant 0 : i32
    return %c0_i32, %c0_i32_0 : i32, i32
  }
  func.func @transform_10(%arg0: i32, %arg1: memref<40xi32, #tpu.memory_space<smem>>) -> (i32, i32) {
    %c0_i32 = arith.constant 0 : i32
    %c0_i32_0 = arith.constant 0 : i32
    %c0_i32_1 = arith.constant 0 : i32
    return %c0_i32, %c0_i32_0 : i32, i32
  }
  func.func @transform_11(%arg0: i32, %arg1: memref<40xi32, #tpu.memory_space<smem>>) -> (i32, i32) {
    %c0_i32 = arith.constant 0 : i32
    %c0_i32_0 = arith.constant 0 : i32
    %c0_i32_1 = arith.constant 0 : i32
    return %c0_i32, %c0_i32_0 : i32, i32
  }
  func.func @transform_12(%arg0: i32, %arg1: memref<40xi32, #tpu.memory_space<smem>>) -> (i32, i32) {
    %c0_i32 = arith.constant 0 : i32
    %c0_i32_0 = arith.constant 0 : i32
    %c0_i32_1 = arith.constant 0 : i32
    return %c0_i32, %c0_i32_0 : i32, i32
  }
  func.func @transform_13(%arg0: i32, %arg1: memref<40xi32, #tpu.memory_space<smem>>) -> (i32, i32) {
    %c0_i32 = arith.constant 0 : i32
    %c0_i32_0 = arith.constant 0 : i32
    %c0_i32_1 = arith.constant 0 : i32
    return %c0_i32, %c0_i32_0 : i32, i32
  }
  func.func @transform_14(%arg0: i32, %arg1: memref<40xi32, #tpu.memory_space<smem>>) -> (i32, i32) {
    %c0_i32 = arith.constant 0 : i32
    %c0_i32_0 = arith.constant 0 : i32
    %c0_i32_1 = arith.constant 0 : i32
    return %c0_i32, %c0_i32_0 : i32, i32
  }
  func.func @transform_15(%arg0: i32, %arg1: memref<40xi32, #tpu.memory_space<smem>>) -> (i32, i32) {
    %c0_i32 = arith.constant 0 : i32
    %c0_i32_0 = arith.constant 0 : i32
    %c0_i32_1 = arith.constant 0 : i32
    return %c0_i32, %c0_i32_0 : i32, i32
  }
  func.func @transform_16(%arg0: i32, %arg1: memref<40xi32, #tpu.memory_space<smem>>) -> (i32, i32) {
    %c0_i32 = arith.constant 0 : i32
    %c0_i32_0 = arith.constant 0 : i32
    %c0_i32_1 = arith.constant 0 : i32
    return %c0_i32, %c0_i32_0 : i32, i32
  }
  func.func @transform_17(%arg0: i32, %arg1: memref<40xi32, #tpu.memory_space<smem>>) -> (i32, i32) {
    %c0_i32 = arith.constant 0 : i32
    %c0_i32_0 = arith.constant 0 : i32
    %c0_i32_1 = arith.constant 0 : i32
    return %c0_i32, %c0_i32_0 : i32, i32
  }
  func.func @transform_18(%arg0: i32, %arg1: memref<40xi32, #tpu.memory_space<smem>>) -> (i32, i32) {
    %c0_i32 = arith.constant 0 : i32
    %c0_i32_0 = arith.constant 0 : i32
    %c0_i32_1 = arith.constant 0 : i32
    return %c0_i32, %c0_i32_0 : i32, i32
  }
  func.func @transform_19(%arg0: i32, %arg1: memref<40xi32, #tpu.memory_space<smem>>) -> (i32, i32) {
    %c0_i32 = arith.constant 0 : i32
    %c0_i32_0 = arith.constant 0 : i32
    %c0_i32_1 = arith.constant 0 : i32
    return %c0_i32, %c0_i32_0 : i32, i32
  }
  func.func @transform_20(%arg0: i32, %arg1: memref<40xi32, #tpu.memory_space<smem>>) -> (i32, i32) {
    %c0_i32 = arith.constant 0 : i32
    %c0_i32_0 = arith.constant 0 : i32
    %c0_i32_1 = arith.constant 0 : i32
    return %c0_i32, %c0_i32_0 : i32, i32
  }
  func.func @transform_21(%arg0: i32, %arg1: memref<40xi32, #tpu.memory_space<smem>>) -> (i32, i32) {
    %c0_i32 = arith.constant 0 : i32
    %c0_i32_0 = arith.constant 0 : i32
    %c0_i32_1 = arith.constant 0 : i32
    return %c0_i32, %c0_i32_0 : i32, i32
  }
  func.func @transform_22(%arg0: i32, %arg1: memref<40xi32, #tpu.memory_space<smem>>) -> (i32, i32) {
    %c0_i32 = arith.constant 0 : i32
    %c0_i32_0 = arith.constant 0 : i32
    %c0_i32_1 = arith.constant 0 : i32
    return %c0_i32, %c0_i32_0 : i32, i32
  }
  func.func @transform_23(%arg0: i32, %arg1: memref<40xi32, #tpu.memory_space<smem>>) -> (i32, i32) {
    %c0_i32 = arith.constant 0 : i32
    %c0_i32_0 = arith.constant 0 : i32
    %c0_i32_1 = arith.constant 0 : i32
    return %c0_i32, %c0_i32_0 : i32, i32
  }
}

</mosaic_0001>

<llo_original>
// kernel: tpu_custom_call.1
$region0: #{tpu_custom_call.1}
  #allocation0 [shape = 'u32[]', space=smem, size = 0x4, offset = 0x4, fixed_abs, tag = 'smem constant byte address 0x4 - core index']
  #allocation1 [shape = 'u32[144,128]{1,0:T(1,128)}', space=vmem, size = 0x12000, scoped, tag = 'internal scratch']
  #allocation2 [shape = 'f32[16,32]{1,0:T(8,128)}', space=vmem, size = 0x2000, scoped, tag = 'scratch operand']
  #allocation3 [shape = 'f32[8,32]{1,0:T(8,128)}', space=vmem, size = 0x1000, scoped, tag = 'scratch operand']
  #allocation4 [shape = 'f32[128,32]{1,0:T(8,128)}', space=vmem, size = 0x10000, scoped, tag = 'scratch operand']
  #allocation5 [shape = 's32[1]{0}', space=sflag, size = 0x4, scoped, tag = 'scoped memory for tpu_custom_call.1']
  #allocation6 [shape = 'u8[512]{0}', space=smem, size = 0x200, scoped, tag = 'prefetched SMEM operand 0']
  %s0 = inlined_call_operand.hbm [shape: s32[40], index: 0, kind: input, shape index: {}]
  %s1 = inlined_call_operand.hbm [shape: bf16[16,12], index: 1, kind: input, shape index: {}]
  %s2 = inlined_call_operand.hbm [shape: bf16[8,6], index: 2, kind: input, shape index: {}]
  %s3 = inlined_call_operand.hbm [shape: bf16[8,16], index: 3, kind: input, shape index: {}]
  %s4 = inlined_call_operand.vmem [shape: bf16[16,8], index: 4, kind: input, shape index: {}]
  %s5 = inlined_call_operand.hbm [shape: bf16[16,16], index: 5, kind: input, shape index: {}]
  %s6 = inlined_call_operand.hbm [shape: bf16[12,32], index: 6, kind: input, shape index: {}]
  %s7 = inlined_call_operand.hbm [shape: f32[1,32], index: 7, kind: input, shape index: {}]
  %s8 = inlined_call_operand.hbm [shape: bf16[6,32], index: 8, kind: input, shape index: {}]
  %s9 = inlined_call_operand.hbm [shape: bf16[12,32], index: 9, kind: input, shape index: {}]
  %s10 = inlined_call_operand.hbm [shape: bf16[6,32], index: 10, kind: input, shape index: {}]
  %s11 = inlined_call_operand.hbm [shape: f32[1,32], index: 11, kind: input, shape index: {}]
  %s12 = inlined_call_operand.hbm [shape: bf16[12,32], index: 12, kind: input, shape index: {}]
  %s13 = inlined_call_operand.hbm [shape: f32[1,32], index: 13, kind: input, shape index: {}]
  %s14 = inlined_call_operand.hbm [shape: f32[1,32], index: 14, kind: input, shape index: {}]
  %s15 = inlined_call_operand.hbm [shape: f32[1,32], index: 15, kind: input, shape index: {}]
  %s16 = inlined_call_operand.hbm [shape: f32[1,32], index: 16, kind: input, shape index: {}]
  %s17 = inlined_call_operand.vmem [shape: bf16[32,32], index: 17, kind: input, shape index: {}]
  %s18 = inlined_call_operand.hbm [shape: f32[1,32], index: 18, kind: input, shape index: {}]
  %s19 = inlined_call_operand.vmem [shape: bf16[32,32], index: 19, kind: input, shape index: {}]
  %s20 = inlined_call_operand.vmem [shape: bf16[32,32], index: 20, kind: input, shape index: {}]
  %s21 = inlined_call_operand.vmem [shape: bf16[32,32], index: 21, kind: input, shape index: {}]
  %s22 = inlined_call_operand.vmem [shape: f32[1,32], index: 22, kind: input, shape index: {}]
  %s23 = inlined_call_operand.vmem [shape: bf16[32,32], index: 23, kind: input, shape index: {}]
  %s24 = inlined_call_operand.hbm [shape: f32[1,128], index: 24, kind: output, shape index: {}]
  %s25 = sld [smem:[#allocation0]]
  $region166: #{tpu_custom_call.1} parent=0
    _
  %s27 = ssub.s32 1, %s25
  %s28 = scalar_select 0, %s27, %s25
  %30 = dma.hbm_to_smem %s0, 16, [#allocation6], [#allocation5]
  %31 = dma.done [#allocation5], 16
  %32 = sfence
  $region1: #{tpu_custom_call.1} parent=0
    #allocation7 [shape = 'u8[4096]{0}', space=vmem, size = 0x1000, scoped, tag = 'input window, operand 1, single buffered']
    #allocation8 [shape = 's32[1]{0}', space=sflag, size = 0x4, scoped, tag = 'scoped memory for tpu_custom_call.1']
    #allocation9 [shape = 's32[1]{0}', space=sflag, size = 0x4, scoped, tag = 'scoped memory for tpu_custom_call.1']
    #allocation10 [shape = 'u8[2048]{0}', space=vmem, size = 0x800, scoped, tag = 'input window, operand 2, single buffered']
    #allocation11 [shape = 's32[1]{0}', space=sflag, size = 0x4, scoped, tag = 'scoped memory for tpu_custom_call.1']
    #allocation12 [shape = 'u8[2048]{0}', space=vmem, size = 0x800, scoped, tag = 'input window, operand 3, single buffered']
    #allocation13 [shape = 'u8[4096]{0}', space=vmem, size = 0x1000, scoped, tag = 'input window, operand 5, single buffered']
    #allocation14 [shape = 's32[1]{0}', space=sflag, size = 0x4, scoped, tag = 'scoped memory for tpu_custom_call.1']
    #allocation15 [shape = 'u8[4096]{0}', space=vmem, size = 0x1000, scoped, tag = 'input window, operand 6, single buffered']
    #allocation16 [shape = 'u8[512]{0}', space=vmem, size = 0x400, scoped, tag = 'input window, operand 7, single buffered']
    #allocation17 [shape = 's32[1]{0}', space=sflag, size = 0x4, scoped, tag = 'scoped memory for tpu_custom_call.1']
    #allocation18 [shape = 'u8[2048]{0}', space=vmem, size = 0x800, scoped, tag = 'input window, operand 8, single buffered']
    #allocation19 [shape = 'u8[4096]{0}', space=vmem, size = 0x1000, scoped, tag = 'input window, operand 9, single buffered']
    #allocation20 [shape = 's32[1]{0}', space=sflag, size = 0x4, scoped, tag = 'scoped memory for tpu_custom_call.1']
    #allocation21 [shape = 'u8[2048]{0}', space=vmem, size = 0x800, scoped, tag = 'input window, operand 10, single buffered']
    #allocation22 [shape = 'u8[512]{0}', space=vmem, size = 0x400, scoped, tag = 'input window, operand 11, single buffered']
    #allocation23 [shape = 's32[1]{0}', space=sflag, size = 0x4, scoped, tag = 'scoped memory for tpu_custom_call.1']
    #allocation24 [shape = 'u8[4096]{0}', space=vmem, size = 0x1000, scoped, tag = 'input window, operand 12, single buffered']
    #allocation25 [shape = 'u8[512]{0}', space=vmem, size = 0x400, scoped, tag = 'input window, operand 13, single buffered']
    #allocation26 [shape = 's32[1]{0}', space=sflag, size = 0x4, scoped, tag = 'scoped memory for tpu_custom_call.1']
    #allocation27 [shape = 'u8[512]{0}', space=vmem, size = 0x400, scoped, tag = 'input window, operand 14, single buffered']
    #allocation28 [shape = 'u8[512]{0}', space=vmem, size = 0x400, scoped, tag = 'input window, operand 15, single buffered']
    #allocation29 [shape = 's32[1]{0}', space=sflag, size = 0x4, scoped, tag = 'scoped memory for tpu_custom_call.1']
    #allocation30 [shape = 'u8[512]{0}', space=vmem, size = 0x400, scoped, tag = 'input window, operand 16, single buffered']
    #allocation31 [shape = 'u8[512]{0}', space=vmem, size = 0x400, scoped, tag = 'input window, operand 18, single buffered']
    #allocation32 [shape = 's32[1]{0}', space=sflag, size = 0x4, scoped, tag = 'scoped memory for tpu_custom_call.1']
    #allocation33 [shape = 'u8[512]{0}', space=vmem, size = 0x400, scoped, tag = 'output window, operand 0, single buffered']
    %33 = vsyncpa [#allocation8], 0
    %34 = vsyncpa [#allocation11], 0
    %35 = vsyncpa [#allocation14], 0
    %36 = vsyncpa [#allocation17], 0
    %37 = vsyncpa [#allocation20], 0
    %38 = vsyncpa [#allocation23], 0
    %39 = vsyncpa [#allocation26], 0
    %40 = vsyncpa [#allocation29], 0
    %41 = vsyncpa [#allocation32], 0
    %42 = vsyncpa [#allocation9], 0
    // Predicated region
    $region2: #{tpu_custom_call.1} parent=1 // pred_check
      _
    $region3: #{tpu_custom_call.1} parent=1 // pred_check_branch
      %44 = sbr.rel (0) target = $region5
    $region4: #{tpu_custom_call.1} parent=1 // pred_region
      %s46 = ssub.s32 128, 128
      %47 = vsyncadd [#allocation8], %s46
      %s48 = sshll.u32 [#allocation7], 4
      %s49 = int_to_ptr.vmem [resolvable:$true] %s48
      %54 = dma.hbm_to_vmem [thread:$0]  %s1, 128, %s49, [#allocation8], 64, 64, 4
    $region5: #{tpu_custom_call.1} parent=1 // pred_fallthru
      _
    // Predicated region
    $region6: #{tpu_custom_call.1} parent=1 // pred_check
      _
    $region7: #{tpu_custom_call.1} parent=1 // pred_check_branch
      %56 = sbr.rel (0) target = $region9
    $region8: #{tpu_custom_call.1} parent=1 // pred_region
      %s58 = ssub.s32 64, 64
      %59 = vsyncadd [#allocation11], %s58
      %s61 = sshll.u32 [#allocation10], 4
      %s62 = int_to_ptr.vmem [resolvable:$true] %s61
      %64 = dma.hbm_to_vmem [thread:$0]  %s2, 64, %s62, [#allocation11]
    $region9: #{tpu_custom_call.1} parent=1 // pred_fallthru
      _
    // Predicated region
    $region10: #{tpu_custom_call.1} parent=1 // pred_check
      _
    $region11: #{tpu_custom_call.1} parent=1 // pred_check_branch
      %66 = sbr.rel (0) target = $region13
    $region12: #{tpu_custom_call.1} parent=1 // pred_region
      %s68 = ssub.s32 64, 64
      %69 = vsyncadd [#allocation11], %s68
      %s71 = sshll.u32 [#allocation12], 4
      %s72 = int_to_ptr.vmem [resolvable:$true] %s71
      %74 = dma.hbm_to_vmem [thread:$0]  %s3, 64, %s72, [#allocation11]
    $region13: #{tpu_custom_call.1} parent=1 // pred_fallthru
      _
    // Predicated region
    $region14: #{tpu_custom_call.1} parent=1 // pred_check
      _
    $region15: #{tpu_custom_call.1} parent=1 // pred_check_branch
      %76 = sbr.rel (0) target = $region17
    $region16: #{tpu_custom_call.1} parent=1 // pred_region
      _
    $region17: #{tpu_custom_call.1} parent=1 // pred_fallthru
      _
    // Predicated region
    $region18: #{tpu_custom_call.1} parent=1 // pred_check
      _
    $region19: #{tpu_custom_call.1} parent=1 // pred_check_branch
      %78 = sbr.rel (0) target = $region21
    $region20: #{tpu_custom_call.1} parent=1 // pred_region
      %s80 = ssub.s32 128, 128
      %81 = vsyncadd [#allocation14], %s80
      %s82 = sshll.u32 [#allocation13], 4
      %s83 = int_to_ptr.vmem [resolvable:$true] %s82
      %88 = dma.hbm_to_vmem [thread:$0]  %s5, 128, %s83, [#allocation14], 64, 64, 4
    $region21: #{tpu_custom_call.1} parent=1 // pred_fallthru
      _
    // Predicated region
    $region22: #{tpu_custom_call.1} parent=1 // pred_check
      _
    $region23: #{tpu_custom_call.1} parent=1 // pred_check_branch
      %90 = sbr.rel (0) target = $region25
    $region24: #{tpu_custom_call.1} parent=1 // pred_region
      %s92 = ssub.s32 128, 128
      %93 = vsyncadd [#allocation14], %s92
      %s94 = sshll.u32 [#allocation15], 4
      %s95 = int_to_ptr.vmem [resolvable:$true] %s94
      %100 = dma.hbm_to_vmem [thread:$0]  %s6, 128, %s95, [#allocation14], 64, 64, 4
    $region25: #{tpu_custom_call.1} parent=1 // pred_fallthru
      _
    // Predicated region
    $region26: #{tpu_custom_call.1} parent=1 // pred_check
      _
    $region27: #{tpu_custom_call.1} parent=1 // pred_check_branch
      %102 = sbr.rel (0) target = $region29
    $region28: #{tpu_custom_call.1} parent=1 // pred_region
      %s104 = ssub.s32 16, 16
      %105 = vsyncadd [#allocation17], %s104
      %s107 = sshll.u32 [#allocation16], 4
      %s108 = int_to_ptr.vmem [resolvable:$true] %s107
      %110 = dma.hbm_to_vmem [thread:$0]  %s7, 16, %s108, [#allocation17]
    $region29: #{tpu_custom_call.1} parent=1 // pred_fallthru
      _
    // Predicated region
    $region30: #{tpu_custom_call.1} parent=1 // pred_check
      _
    $region31: #{tpu_custom_call.1} parent=1 // pred_check_branch
      %112 = sbr.rel (0) target = $region33
    $region32: #{tpu_custom_call.1} parent=1 // pred_region
      %s114 = ssub.s32 64, 64
      %115 = vsyncadd [#allocation17], %s114
      %s117 = sshll.u32 [#allocation18], 4
      %s118 = int_to_ptr.vmem [resolvable:$true] %s117
      %120 = dma.hbm_to_vmem [thread:$0]  %s8, 64, %s118, [#allocation17]
    $region33: #{tpu_custom_call.1} parent=1 // pred_fallthru
      _
    // Predicated region
    $region34: #{tpu_custom_call.1} parent=1 // pred_check
      _
    $region35: #{tpu_custom_call.1} parent=1 // pred_check_branch
      %122 = sbr.rel (0) target = $region37
    $region36: #{tpu_custom_call.1} parent=1 // pred_region
      %s124 = ssub.s32 128, 128
      %125 = vsyncadd [#allocation20], %s124
      %s126 = sshll.u32 [#allocation19], 4
      %s127 = int_to_ptr.vmem [resolvable:$true] %s126
      %132 = dma.hbm_to_vmem [thread:$0]  %s9, 128, %s127, [#allocation20], 64, 64, 4
    $region37: #{tpu_custom_call.1} parent=1 // pred_fallthru
      _
    // Predicated region
    $region38: #{tpu_custom_call.1} parent=1 // pred_check
      _
    $region39: #{tpu_custom_call.1} parent=1 // pred_check_branch
      %134 = sbr.rel (0) target = $region41
    $region40: #{tpu_custom_call.1} parent=1 // pred_region
      %s136 = ssub.s32 64, 64
      %137 = vsyncadd [#allocation20], %s136
      %s139 = sshll.u32 [#allocation21], 4
      %s140 = int_to_ptr.vmem [resolvable:$true] %s139
      %142 = dma.hbm_to_vmem [thread:$0]  %s10, 64, %s140, [#allocation20]
    $region41: #{tpu_custom_call.1} parent=1 // pred_fallthru
      _
    // Predicated region
    $region42: #{tpu_custom_call.1} parent=1 // pred_check
      _
    $region43: #{tpu_custom_call.1} parent=1 // pred_check_branch
      %144 = sbr.rel (0) target = $region45
    $region44: #{tpu_custom_call.1} parent=1 // pred_region
      %s146 = ssub.s32 16, 16
      %147 = vsyncadd [#allocation23], %s146
      %s149 = sshll.u32 [#allocation22], 4
      %s150 = int_to_ptr.vmem [resolvable:$true] %s149
      %152 = dma.hbm_to_vmem [thread:$0]  %s11, 16, %s150, [#allocation23]
    $region45: #{tpu_custom_call.1} parent=1 // pred_fallthru
      _
    // Predicated region
    $region46: #{tpu_custom_call.1} parent=1 // pred_check
      _
    $region47: #{tpu_custom_call.1} parent=1 // pred_check_branch
      %154 = sbr.rel (0) target = $region49
    $region48: #{tpu_custom_call.1} parent=1 // pred_region
      %s156 = ssub.s32 128, 128
      %157 = vsyncadd [#allocation23], %s156
      %s158 = sshll.u32 [#allocation24], 4
      %s159 = int_to_ptr.vmem [resolvable:$true] %s158
      %164 = dma.hbm_to_vmem [thread:$0]  %s12, 128, %s159, [#allocation23], 64, 64, 4
    $region49: #{tpu_custom_call.1} parent=1 // pred_fallthru
      _
    // Predicated region
    $region50: #{tpu_custom_call.1} parent=1 // pred_check
      _
    $region51: #{tpu_custom_call.1} parent=1 // pred_check_branch
      %166 = sbr.rel (0) target = $region53
    $region52: #{tpu_custom_call.1} parent=1 // pred_region
      %s168 = ssub.s32 16, 16
      %169 = vsyncadd [#allocation26], %s168
      %s171 = sshll.u32 [#allocation25], 4
      %s172 = int_to_ptr.vmem [resolvable:$true] %s171
      %174 = dma.hbm_to_vmem [thread:$0]  %s13, 16, %s172, [#allocation26]
    $region53: #{tpu_custom_call.1} parent=1 // pred_fallthru
      _
    // Predicated region
    $region54: #{tpu_custom_call.1} parent=1 // pred_check
      _
    $region55: #{tpu_custom_call.1} parent=1 // pred_check_branch
      %176 = sbr.rel (0) target = $region57
    $region56: #{tpu_custom_call.1} parent=1 // pred_region
      %s178 = ssub.s32 16, 16
      %179 = vsyncadd [#allocation26], %s178
      %s181 = sshll.u32 [#allocation27], 4
      %s182 = int_to_ptr.vmem [resolvable:$true] %s181
      %184 = dma.hbm_to_vmem [thread:$0]  %s14, 16, %s182, [#allocation26]
    $region57: #{tpu_custom_call.1} parent=1 // pred_fallthru
      _
    // Predicated region
    $region58: #{tpu_custom_call.1} parent=1 // pred_check
      _
    $region59: #{tpu_custom_call.1} parent=1 // pred_check_branch
      %186 = sbr.rel (0) target = $region61
    $region60: #{tpu_custom_call.1} parent=1 // pred_region
      %s188 = ssub.s32 16, 16
      %189 = vsyncadd [#allocation29], %s188
      %s191 = sshll.u32 [#allocation28], 4
      %s192 = int_to_ptr.vmem [resolvable:$true] %s191
      %194 = dma.hbm_to_vmem [thread:$0]  %s15, 16, %s192, [#allocation29]
    $region61: #{tpu_custom_call.1} parent=1 // pred_fallthru
      _
    // Predicated region
    $region62: #{tpu_custom_call.1} parent=1 // pred_check
      _
    $region63: #{tpu_custom_call.1} parent=1 // pred_check_branch
      %196 = sbr.rel (0) target = $region65
    $region64: #{tpu_custom_call.1} parent=1 // pred_region
      %s198 = ssub.s32 16, 16
      %199 = vsyncadd [#allocation29], %s198
      %s201 = sshll.u32 [#allocation30], 4
      %s202 = int_to_ptr.vmem [resolvable:$true] %s201
      %204 = dma.hbm_to_vmem [thread:$0]  %s16, 16, %s202, [#allocation29]
    $region65: #{tpu_custom_call.1} parent=1 // pred_fallthru
      _
    // Predicated region
    $region66: #{tpu_custom_call.1} parent=1 // pred_check
      _
    $region67: #{tpu_custom_call.1} parent=1 // pred_check_branch
      %206 = sbr.rel (0) target = $region69
    $region68: #{tpu_custom_call.1} parent=1 // pred_region
      _
    $region69: #{tpu_custom_call.1} parent=1 // pred_fallthru
      _
    // Predicated region
    $region70: #{tpu_custom_call.1} parent=1 // pred_check
      _
    $region71: #{tpu_custom_call.1} parent=1 // pred_check_branch
      %208 = sbr.rel (0) target = $region73
    $region72: #{tpu_custom_call.1} parent=1 // pred_region
      %s210 = ssub.s32 16, 16
      %211 = vsyncadd [#allocation32], %s210
      %s213 = sshll.u32 [#allocation31], 4
      %s214 = int_to_ptr.vmem [resolvable:$true] %s213
      %216 = dma.hbm_to_vmem [thread:$0]  %s18, 16, %s214, [#allocation32]
    $region73: #{tpu_custom_call.1} parent=1 // pred_fallthru
      _
    // Predicated region
    $region74: #{tpu_custom_call.1} parent=1 // pred_check
      _
    $region75: #{tpu_custom_call.1} parent=1 // pred_check_branch
      %218 = sbr.rel (0) target = $region77
    $region76: #{tpu_custom_call.1} parent=1 // pred_region
      _
    $region77: #{tpu_custom_call.1} parent=1 // pred_fallthru
      _
    // Predicated region
    $region78: #{tpu_custom_call.1} parent=1 // pred_check
      _
    $region79: #{tpu_custom_call.1} parent=1 // pred_check_branch
      %220 = sbr.rel (0) target = $region81
    $region80: #{tpu_custom_call.1} parent=1 // pred_region
      _
    $region81: #{tpu_custom_call.1} parent=1 // pred_fallthru
      _
    // Predicated region
    $region82: #{tpu_custom_call.1} parent=1 // pred_check
      _
    $region83: #{tpu_custom_call.1} parent=1 // pred_check_branch
      %222 = sbr.rel (0) target = $region85
    $region84: #{tpu_custom_call.1} parent=1 // pred_region
      _
    $region85: #{tpu_custom_call.1} parent=1 // pred_fallthru
      _
    // Predicated region
    $region86: #{tpu_custom_call.1} parent=1 // pred_check
      _
    $region87: #{tpu_custom_call.1} parent=1 // pred_check_branch
      %224 = sbr.rel (0) target = $region89
    $region88: #{tpu_custom_call.1} parent=1 // pred_region
      _
    $region89: #{tpu_custom_call.1} parent=1 // pred_fallthru
      _
    // Predicated region
    $region90: #{tpu_custom_call.1} parent=1 // pred_check
      _
    $region91: #{tpu_custom_call.1} parent=1 // pred_check_branch
      %226 = sbr.rel (0) target = $region93
    $region92: #{tpu_custom_call.1} parent=1 // pred_region
      _
    $region93: #{tpu_custom_call.1} parent=1 // pred_fallthru
      _
    // Predicated region
    $region94: #{tpu_custom_call.1} parent=1 // pred_check
      _
    $region95: #{tpu_custom_call.1} parent=1 // pred_check_branch
      %228 = sbr.rel (0) target = $region97
    $region96: #{tpu_custom_call.1} parent=1 // pred_region
      %229 = dma.done [#allocation8], 128
    $region97: #{tpu_custom_call.1} parent=1 // pred_fallthru
      _
    // Predicated region
    $region98: #{tpu_custom_call.1} parent=1 // pred_check
      _
    $region99: #{tpu_custom_call.1} parent=1 // pred_check_branch
      %231 = sbr.rel (0) target = $region101
    $region100: #{tpu_custom_call.1} parent=1 // pred_region
      %232 = dma.done [#allocation11], 64
    $region101: #{tpu_custom_call.1} parent=1 // pred_fallthru
      _
    // Predicated region
    $region102: #{tpu_custom_call.1} parent=1 // pred_check
      _
    $region103: #{tpu_custom_call.1} parent=1 // pred_check_branch
      %234 = sbr.rel (0) target = $region105
    $region104: #{tpu_custom_call.1} parent=1 // pred_region
      %235 = dma.done [#allocation11], 64
    $region105: #{tpu_custom_call.1} parent=1 // pred_fallthru
      _
    // Predicated region
    $region106: #{tpu_custom_call.1} parent=1 // pred_check
      _
    $region107: #{tpu_custom_call.1} parent=1 // pred_check_branch
      %237 = sbr.rel (0) target = $region109
    $region108: #{tpu_custom_call.1} parent=1 // pred_region
      %238 = dma.done [#allocation14], 128
    $region109: #{tpu_custom_call.1} parent=1 // pred_fallthru
      _
    // Predicated region
    $region110: #{tpu_custom_call.1} parent=1 // pred_check
      _
    $region111: #{tpu_custom_call.1} parent=1 // pred_check_branch
      %240 = sbr.rel (0) target = $region113
    $region112: #{tpu_custom_call.1} parent=1 // pred_region
      %241 = dma.done [#allocation14], 128
    $region113: #{tpu_custom_call.1} parent=1 // pred_fallthru
      _
    // Predicated region
    $region114: #{tpu_custom_call.1} parent=1 // pred_check
      _
    $region115: #{tpu_custom_call.1} parent=1 // pred_check_branch
      %243 = sbr.rel (0) target = $region117
    $region116: #{tpu_custom_call.1} parent=1 // pred_region
      %244 = dma.done [#allocation17], 16
    $region117: #{tpu_custom_call.1} parent=1 // pred_fallthru
      _
    // Predicated region
    $region118: #{tpu_custom_call.1} parent=1 // pred_check
      _
    $region119: #{tpu_custom_call.1} parent=1 // pred_check_branch
      %246 = sbr.rel (0) target = $region121
    $region120: #{tpu_custom_call.1} parent=1 // pred_region
      %247 = dma.done [#allocation17], 64
    $region121: #{tpu_custom_call.1} parent=1 // pred_fallthru
      _
    // Predicated region
    $region122: #{tpu_custom_call.1} parent=1 // pred_check
      _
    $region123: #{tpu_custom_call.1} parent=1 // pred_check_branch
      %249 = sbr.rel (0) target = $region125
    $region124: #{tpu_custom_call.1} parent=1 // pred_region
      %250 = dma.done [#allocation20], 128
    $region125: #{tpu_custom_call.1} parent=1 // pred_fallthru
      _
    // Predicated region
    $region126: #{tpu_custom_call.1} parent=1 // pred_check
      _
    $region127: #{tpu_custom_call.1} parent=1 // pred_check_branch
      %252 = sbr.rel (0) target = $region129
    $region128: #{tpu_custom_call.1} parent=1 // pred_region
      %253 = dma.done [#allocation20], 64
    $region129: #{tpu_custom_call.1} parent=1 // pred_fallthru
      _
    // Predicated region
    $region130: #{tpu_custom_call.1} parent=1 // pred_check
      _
    $region131: #{tpu_custom_call.1} parent=1 // pred_check_branch
      %255 = sbr.rel (0) target = $region133
    $region132: #{tpu_custom_call.1} parent=1 // pred_region
      %256 = dma.done [#allocation23], 16
    $region133: #{tpu_custom_call.1} parent=1 // pred_fallthru
      _
    // Predicated region
    $region134: #{tpu_custom_call.1} parent=1 // pred_check
      _
    $region135: #{tpu_custom_call.1} parent=1 // pred_check_branch
      %258 = sbr.rel (0) target = $region137
    $region136: #{tpu_custom_call.1} parent=1 // pred_region
      %259 = dma.done [#allocation23], 128
    $region137: #{tpu_custom_call.1} parent=1 // pred_fallthru
      _
    // Predicated region
    $region138: #{tpu_custom_call.1} parent=1 // pred_check
      _
    $region139: #{tpu_custom_call.1} parent=1 // pred_check_branch
      %261 = sbr.rel (0) target = $region141
    $region140: #{tpu_custom_call.1} parent=1 // pred_region
      %262 = dma.done [#allocation26], 16
    $region141: #{tpu_custom_call.1} parent=1 // pred_fallthru
      _
    // Predicated region
    $region142: #{tpu_custom_call.1} parent=1 // pred_check
      _
    $region143: #{tpu_custom_call.1} parent=1 // pred_check_branch
      %264 = sbr.rel (0) target = $region145
    $region144: #{tpu_custom_call.1} parent=1 // pred_region
      %265 = dma.done [#allocation26], 16
    $region145: #{tpu_custom_call.1} parent=1 // pred_fallthru
      _
    // Predicated region
    $region146: #{tpu_custom_call.1} parent=1 // pred_check
      _
    $region147: #{tpu_custom_call.1} parent=1 // pred_check_branch
      %267 = sbr.rel (0) target = $region149
    $region148: #{tpu_custom_call.1} parent=1 // pred_region
      %268 = dma.done [#allocation29], 16
    $region149: #{tpu_custom_call.1} parent=1 // pred_fallthru
      _
    // Predicated region
    $region150: #{tpu_custom_call.1} parent=1 // pred_check
      _
    $region151: #{tpu_custom_call.1} parent=1 // pred_check_branch
      %270 = sbr.rel (0) target = $region153
    $region152: #{tpu_custom_call.1} parent=1 // pred_region
      %271 = dma.done [#allocation29], 16
    $region153: #{tpu_custom_call.1} parent=1 // pred_fallthru
      _
    // Predicated region
    $region154: #{tpu_custom_call.1} parent=1 // pred_check
      _
    $region155: #{tpu_custom_call.1} parent=1 // pred_check_branch
      %273 = sbr.rel (0) target = $region157
    $region156: #{tpu_custom_call.1} parent=1 // pred_region
      %274 = dma.done [#allocation32], 16
    $region157: #{tpu_custom_call.1} parent=1 // pred_fallthru
      _
    %v276 = vld [vmem:[#allocation7] sm:$0xf]
    %v277 = vld [vmem:[#allocation7 + $0x4] sm:$0xf]
    %v278 = vld [vmem:[#allocation10] sm:$0xf]
    %v279 = vld [vmem:[#allocation15] sm:$0xf]
    %v280 = vld [vmem:[#allocation15 + $0x4] sm:$0x3]
    %v281 = vld [vmem:[%s4] sm:$0xf]
    %v282 = vld [vmem:[%s4 + $0x4] sm:$0xf]
    %v285 = vunpack.c.l.b16 %v281
    %v286 = vunpack.c.l.b16 %v282
    %v287 = vpack.c.b16 %v286, %v285
    %vm288 = vcmask 64512
    %v290 = vsel %vm288, %v287, 0
    %vm292 = vcmask 1043456
    %v294 = vsel %vm292, %v278, 0
    %296 = vmatprep.subr.bf16.mxu0 0
    %297 = vmatpush1.bf16.msra.mxu0 %v294
    %298 = vmatprep.subr.bf16.mxu0 0
    %299 = vmatpush1.bf16.msra.mxu0 0
    %300 = vmatprep.subr.bf16.mxu0 0
    %301 = vmatpush1.bf16.msra.mxu0 0
    %302 = vmatprep.subr.bf16.mxu0 0
    %303 = vmatpush1.bf16.msra.mxu0 0
    %304 = vmatprep.subr.bf16.mxu0 0
    %305 = vmatpush1.bf16.msra.mxu0 0
    %306 = vmatprep.subr.bf16.mxu0 0
    %307 = vmatpush1.bf16.msra.mxu0 0
    %308 = vmatprep.subr.bf16.mxu0 0
    %309 = vmatpush1.bf16.msra.mxu0 0
    %310 = vmatprep.subr.bf16.mxu0 0
    %311 = vmatpush1.bf16.msra.mxu0 0
    %312 = vmatprep.subr.bf16.mxu0 0
    %313 = vmatpush1.bf16.msra.mxu0 0
    %314 = vmatprep.subr.bf16.mxu0 0
    %315 = vmatpush1.bf16.msra.mxu0 0
    %316 = vmatprep.subr.bf16.mxu0 0
    %317 = vmatpush1.bf16.msra.mxu0 0
    %318 = vmatprep.subr.bf16.mxu0 0
    %319 = vmatpush1.bf16.msra.mxu0 0
    %320 = vmatprep.subr.bf16.mxu0 0
    %321 = vmatpush1.bf16.msra.mxu0 0
    %322 = vmatprep.subr.bf16.mxu0 0
    %323 = vmatpush1.bf16.msra.mxu0 0
    %324 = vmatprep.subr.bf16.mxu0 0
    %325 = vmatpush1.bf16.msra.mxu0 0
    %326 = vmatprep.subr.bf16.mxu0 0
    %327 = vmatpush1.bf16.msra.mxu0 0
    %328 = vmatprep.mubr.bf16.mxu0 0
    %329 = vmatmul.mubr.bf16.gmra.mrb[0].mxu0 %v290
    %v330 = vpop.f32.mrb[0].mxu0
    %v331 = vadd.f32 0.0, %v330
    %v332 = vpop.f32.mrb[0].mxu0
    %v333 = vpop.f32.mrb[0].mxu0
    %v334 = vadd.f32 0.0, %v333
    %v335 = vpop.f32.mrb[0].mxu0
    %336 = vdwg.mxu0
    %v337 = vpack.c.bf16 %v334, %v331
    %v338 = vld [vmem:[#allocation18] sm:$0x7]
    %vm339 = vcmask 48128
    %v341 = vsel %vm339, %v337, 0
    %vm343 = vcmask 1042432
    %v345 = vsel %vm343, %v338, 0
    %347 = vmatprep.subr.bf16.mxu0 0
    %348 = vmatpush1.bf16.msra.mxu0 %v345
    %349 = vmatprep.subr.bf16.mxu0 0
    %350 = vmatpush1.bf16.msra.mxu0 0
    %351 = vmatprep.subr.bf16.mxu0 0
    %352 = vmatpush1.bf16.msra.mxu0 0
    %353 = vmatprep.subr.bf16.mxu0 0
    %354 = vmatpush1.bf16.msra.mxu0 0
    %355 = vmatprep.subr.bf16.mxu0 0
    %356 = vmatpush1.bf16.msra.mxu0 0
    %357 = vmatprep.subr.bf16.mxu0 0
    %358 = vmatpush1.bf16.msra.mxu0 0
    %359 = vmatprep.subr.bf16.mxu0 0
    %360 = vmatpush1.bf16.msra.mxu0 0
    %361 = vmatprep.subr.bf16.mxu0 0
    %362 = vmatpush1.bf16.msra.mxu0 0
    %363 = vmatprep.subr.bf16.mxu0 0
    %364 = vmatpush1.bf16.msra.mxu0 0
    %365 = vmatprep.subr.bf16.mxu0 0
    %366 = vmatpush1.bf16.msra.mxu0 0
    %367 = vmatprep.subr.bf16.mxu0 0
    %368 = vmatpush1.bf16.msra.mxu0 0
    %369 = vmatprep.subr.bf16.mxu0 0
    %370 = vmatpush1.bf16.msra.mxu0 0
    %371 = vmatprep.subr.bf16.mxu0 0
    %372 = vmatpush1.bf16.msra.mxu0 0
    %373 = vmatprep.subr.bf16.mxu0 0
    %374 = vmatpush1.bf16.msra.mxu0 0
    %375 = vmatprep.subr.bf16.mxu0 0
    %376 = vmatpush1.bf16.msra.mxu0 0
    %377 = vmatprep.subr.bf16.mxu0 0
    %378 = vmatpush1.bf16.msra.mxu0 0
    %379 = vmatprep.mubr.bf16.mxu0 0
    %380 = vmatmul.mubr.bf16.gmra.mrb[0].mxu0 %v341
    %v381 = vpop.f32.mrb[0].mxu0
    %v382 = vadd.f32 0.0, %v381
    %v383 = vpop.f32.mrb[0].mxu0
    %v384 = vpop.f32.mrb[0].mxu0
    %v385 = vadd.f32 0.0, %v384
    %v386 = vpop.f32.mrb[0].mxu0
    %387 = vdwg.mxu0
    %v390 = vunpack.c.l.b16 %v276
    %v391 = vunpack.c.l.b16 %v277
    %v392 = vpack.c.b16 %v391, %v390
    %v395 = vunpack.c.l.b16 %v279
    %v396 = vunpack.c.l.b16 %v280
    %v397 = vpack.c.b16 %v396, %v395
    %vm398 = vcmask 97280
    %v400 = vsel %vm398, %v392, 0
    %vm402 = vcmask 1045504
    %v404 = vsel %vm402, %v397, 0
    %406 = vmatprep.subr.bf16.mxu0 0
    %407 = vmatpush1.bf16.msra.mxu0 %v404
    %408 = vmatprep.subr.bf16.mxu0 0
    %409 = vmatpush1.bf16.msra.mxu0 0
    %410 = vmatprep.subr.bf16.mxu0 0
    %411 = vmatpush1.bf16.msra.mxu0 0
    %412 = vmatprep.subr.bf16.mxu0 0
    %413 = vmatpush1.bf16.msra.mxu0 0
    %414 = vmatprep.subr.bf16.mxu0 0
    %415 = vmatpush1.bf16.msra.mxu0 0
    %416 = vmatprep.subr.bf16.mxu0 0
    %417 = vmatpush1.bf16.msra.mxu0 0
    %418 = vmatprep.subr.bf16.mxu0 0
    %419 = vmatpush1.bf16.msra.mxu0 0
    %420 = vmatprep.subr.bf16.mxu0 0
    %421 = vmatpush1.bf16.msra.mxu0 0
    %422 = vmatprep.subr.bf16.mxu0 0
    %423 = vmatpush1.bf16.msra.mxu0 0
    %424 = vmatprep.subr.bf16.mxu0 0
    %425 = vmatpush1.bf16.msra.mxu0 0
    %426 = vmatprep.subr.bf16.mxu0 0
    %427 = vmatpush1.bf16.msra.mxu0 0
    %428 = vmatprep.subr.bf16.mxu0 0
    %429 = vmatpush1.bf16.msra.mxu0 0
    %430 = vmatprep.subr.bf16.mxu0 0
    %431 = vmatpush1.bf16.msra.mxu0 0
    %432 = vmatprep.subr.bf16.mxu0 0
    %433 = vmatpush1.bf16.msra.mxu0 0
    %434 = vmatprep.subr.bf16.mxu0 0
    %435 = vmatpush1.bf16.msra.mxu0 0
    %436 = vmatprep.subr.bf16.mxu0 0
    %437 = vmatpush1.bf16.msra.mxu0 0
    %438 = vmatprep.mubr.bf16.mxu0 0
    %439 = vmatmul.mubr.bf16.gmra.mrb[0].mxu0 %v400
    %v440 = vpop.f32.mrb[0].mxu0
    %v441 = vadd.f32 %v382, %v440
    %v442 = vpop.f32.mrb[0].mxu0
    %v443 = vpop.f32.mrb[0].mxu0
    %v444 = vadd.f32 %v385, %v443
    %v445 = vpop.f32.mrb[0].mxu0
    %446 = vdwg.mxu0
    %v447 = vld [vmem:[#allocation13] sm:$0xf]
    %v448 = vld [vmem:[#allocation13 + $0x4] sm:$0xf]
    %v451 = vunpack.c.l.b16 %v447
    %v452 = vunpack.c.l.b16 %v448
    %v453 = vpack.c.b16 %v452, %v451
    %vm455 = vcmask 130048
    %v457 = vsel %vm455, %v453, 0
    %459 = vmatprep.subr.bf16.mxu0 0
    %460 = vmatpush1.bf16.msra.mxu0 %v392
    %461 = vmatprep.subr.bf16.mxu0 0
    %462 = vmatpush1.bf16.msra.mxu0 0
    %463 = vmatprep.subr.bf16.mxu0 0
    %464 = vmatpush1.bf16.msra.mxu0 0
    %465 = vmatprep.subr.bf16.mxu0 0
    %466 = vmatpush1.bf16.msra.mxu0 0
    %467 = vmatprep.subr.bf16.mxu0 0
    %468 = vmatpush1.bf16.msra.mxu0 0
    %469 = vmatprep.subr.bf16.mxu0 0
    %470 = vmatpush1.bf16.msra.mxu0 0
    %471 = vmatprep.subr.bf16.mxu0 0
    %472 = vmatpush1.bf16.msra.mxu0 0
    %473 = vmatprep.subr.bf16.mxu0 0
    %474 = vmatpush1.bf16.msra.mxu0 0
    %475 = vmatprep.subr.bf16.mxu0 0
    %476 = vmatpush1.bf16.msra.mxu0 0
    %477 = vmatprep.subr.bf16.mxu0 0
    %478 = vmatpush1.bf16.msra.mxu0 0
    %479 = vmatprep.subr.bf16.mxu0 0
    %480 = vmatpush1.bf16.msra.mxu0 0
    %481 = vmatprep.subr.bf16.mxu0 0
    %482 = vmatpush1.bf16.msra.mxu0 0
    %483 = vmatprep.subr.bf16.mxu0 0
    %484 = vmatpush1.bf16.msra.mxu0 0
    %485 = vmatprep.subr.bf16.mxu0 0
    %486 = vmatpush1.bf16.msra.mxu0 0
    %487 = vmatprep.subr.bf16.mxu0 0
    %488 = vmatpush1.bf16.msra.mxu0 0
    %489 = vmatprep.subr.bf16.mxu0 0
    %490 = vmatpush1.bf16.msra.mxu0 0
    %491 = vmatprep.mubr.bf16.mxu0 0
    %492 = vmatmul.mubr.bf16.gmra.mrb[0].mxu0 %v457
    %v493 = vpop.f32.mrb[0].mxu0
    %v494 = vadd.f32 0.0, %v493
    %v495 = vpop.f32.mrb[0].mxu0
    %v496 = vpop.f32.mrb[0].mxu0
    %v497 = vadd.f32 0.0, %v496
    %v498 = vpop.f32.mrb[0].mxu0
    %499 = vdwg.mxu0
    %v500 = vpack.c.bf16 %v497, %v494
    %v501 = vld [vmem:[#allocation19] sm:$0xf]
    %v502 = vld [vmem:[#allocation19 + $0x4] sm:$0x3]
    %v505 = vunpack.c.l.b16 %v501
    %v506 = vunpack.c.l.b16 %v502
    %v507 = vpack.c.b16 %v506, %v505
    %v509 = vsel %vm398, %v500, 0
    %v512 = vsel %vm402, %v507, 0
    %514 = vmatprep.subr.bf16.mxu0 0
    %515 = vmatpush1.bf16.msra.mxu0 %v512
    %516 = vmatprep.subr.bf16.mxu0 0
    %517 = vmatpush1.bf16.msra.mxu0 0
    %518 = vmatprep.subr.bf16.mxu0 0
    %519 = vmatpush1.bf16.msra.mxu0 0
    %520 = vmatprep.subr.bf16.mxu0 0
    %521 = vmatpush1.bf16.msra.mxu0 0
    %522 = vmatprep.subr.bf16.mxu0 0
    %523 = vmatpush1.bf16.msra.mxu0 0
    %524 = vmatprep.subr.bf16.mxu0 0
    %525 = vmatpush1.bf16.msra.mxu0 0
    %526 = vmatprep.subr.bf16.mxu0 0
    %527 = vmatpush1.bf16.msra.mxu0 0
    %528 = vmatprep.subr.bf16.mxu0 0
    %529 = vmatpush1.bf16.msra.mxu0 0
    %530 = vmatprep.subr.bf16.mxu0 0
    %531 = vmatpush1.bf16.msra.mxu0 0
    %532 = vmatprep.subr.bf16.mxu0 0
    %533 = vmatpush1.bf16.msra.mxu0 0
    %534 = vmatprep.subr.bf16.mxu0 0
    %535 = vmatpush1.bf16.msra.mxu0 0
    %536 = vmatprep.subr.bf16.mxu0 0
    %537 = vmatpush1.bf16.msra.mxu0 0
    %538 = vmatprep.subr.bf16.mxu0 0
    %539 = vmatpush1.bf16.msra.mxu0 0
    %540 = vmatprep.subr.bf16.mxu0 0
    %541 = vmatpush1.bf16.msra.mxu0 0
    %542 = vmatprep.subr.bf16.mxu0 0
    %543 = vmatpush1.bf16.msra.mxu0 0
    %544 = vmatprep.subr.bf16.mxu0 0
    %545 = vmatpush1.bf16.msra.mxu0 0
    %546 = vmatprep.mubr.bf16.mxu0 0
    %547 = vmatmul.mubr.bf16.gmra.mrb[0].mxu0 %v509
    %v548 = vpop.f32.mrb[0].mxu0
    %v549 = vadd.f32 0.0, %v548
    %v550 = vpop.f32.mrb[0].mxu0
    %v551 = vpop.f32.mrb[0].mxu0
    %v552 = vadd.f32 0.0, %v551
    %v553 = vpop.f32.mrb[0].mxu0
    %554 = vdwg.mxu0
    %v555 = vadd.f32 %v441, %v549
    %v556 = vadd.f32 %v444, %v552
    %v557 = vld [vmem:[#allocation16] sm:$0x1]
    %v559 = vlaneseq
    %v560 = vshrl.u32 %v559, 7
    %v561 = vsub.s32 0, %v560
    %v562 = vrot.slane %v557, %v561
    %v564 = vadd.f32 %v555, %v562
    %v565 = vadd.f32 %v556, %v562
    %v566 = vld [vmem:[#allocation21] sm:$0x7]
    %v567 = vld [vmem:[#allocation12] sm:$0xf]
    %v569 = vsel %vm455, %v567, 0
    %571 = vmatprep.subr.bf16.mxu0 0
    %572 = vmatpush1.bf16.msra.mxu0 %v392
    %573 = vmatprep.subr.bf16.mxu0 0
    %574 = vmatpush1.bf16.msra.mxu0 0
    %575 = vmatprep.subr.bf16.mxu0 0
    %576 = vmatpush1.bf16.msra.mxu0 0
    %577 = vmatprep.subr.bf16.mxu0 0
    %578 = vmatpush1.bf16.msra.mxu0 0
    %579 = vmatprep.subr.bf16.mxu0 0
    %580 = vmatpush1.bf16.msra.mxu0 0
    %581 = vmatprep.subr.bf16.mxu0 0
    %582 = vmatpush1.bf16.msra.mxu0 0
    %583 = vmatprep.subr.bf16.mxu0 0
    %584 = vmatpush1.bf16.msra.mxu0 0
    %585 = vmatprep.subr.bf16.mxu0 0
    %586 = vmatpush1.bf16.msra.mxu0 0
    %587 = vmatprep.subr.bf16.mxu0 0
    %588 = vmatpush1.bf16.msra.mxu0 0
    %589 = vmatprep.subr.bf16.mxu0 0
    %590 = vmatpush1.bf16.msra.mxu0 0
    %591 = vmatprep.subr.bf16.mxu0 0
    %592 = vmatpush1.bf16.msra.mxu0 0
    %593 = vmatprep.subr.bf16.mxu0 0
    %594 = vmatpush1.bf16.msra.mxu0 0
    %595 = vmatprep.subr.bf16.mxu0 0
    %596 = vmatpush1.bf16.msra.mxu0 0
    %597 = vmatprep.subr.bf16.mxu0 0
    %598 = vmatpush1.bf16.msra.mxu0 0
    %599 = vmatprep.subr.bf16.mxu0 0
    %600 = vmatpush1.bf16.msra.mxu0 0
    %601 = vmatprep.subr.bf16.mxu0 0
    %602 = vmatpush1.bf16.msra.mxu0 0
    %603 = vmatprep.mubr.bf16.mxu0 0
    %604 = vmatmul.mubr.bf16.gmra.mrb[0].mxu0 %v569
    %v605 = vpop.f32.mrb[0].mxu0
    %v606 = vadd.f32 0.0, %v605
    %v607 = vpop.f32.mrb[0].mxu0
    %v608 = vpop.f32.mrb[0].mxu0
    %v609 = vpop.f32.mrb[0].mxu0
    %610 = vdwg.mxu0
    %v611 = vpack.c.bf16 %v606, %v606
    %v612 = vld [vmem:[#allocation24] sm:$0xf]
    %v613 = vld [vmem:[#allocation24 + $0x4] sm:$0x3]
    %v616 = vunpack.c.l.b16 %v612
    %v617 = vunpack.c.l.b16 %v613
    %v618 = vpack.c.b16 %v617, %v616
    %v620 = vsel %vm398, %v611, 0
    %v623 = vsel %vm402, %v618, 0
    %625 = vmatprep.subr.bf16.mxu0 0
    %626 = vmatpush1.bf16.msra.mxu0 %v623
    %627 = vmatprep.subr.bf16.mxu0 0
    %628 = vmatpush1.bf16.msra.mxu0 0
    %629 = vmatprep.subr.bf16.mxu0 0
    %630 = vmatpush1.bf16.msra.mxu0 0
    %631 = vmatprep.subr.bf16.mxu0 0
    %632 = vmatpush1.bf16.msra.mxu0 0
    %633 = vmatprep.subr.bf16.mxu0 0
    %634 = vmatpush1.bf16.msra.mxu0 0
    %635 = vmatprep.subr.bf16.mxu0 0
    %636 = vmatpush1.bf16.msra.mxu0 0
    %637 = vmatprep.subr.bf16.mxu0 0
    %638 = vmatpush1.bf16.msra.mxu0 0
    %639 = vmatprep.subr.bf16.mxu0 0
    %640 = vmatpush1.bf16.msra.mxu0 0
    %641 = vmatprep.subr.bf16.mxu0 0
    %642 = vmatpush1.bf16.msra.mxu0 0
    %643 = vmatprep.subr.bf16.mxu0 0
    %644 = vmatpush1.bf16.msra.mxu0 0
    %645 = vmatprep.subr.bf16.mxu0 0
    %646 = vmatpush1.bf16.msra.mxu0 0
    %647 = vmatprep.subr.bf16.mxu0 0
    %648 = vmatpush1.bf16.msra.mxu0 0
    %649 = vmatprep.subr.bf16.mxu0 0
    %650 = vmatpush1.bf16.msra.mxu0 0
    %651 = vmatprep.subr.bf16.mxu0 0
    %652 = vmatpush1.bf16.msra.mxu0 0
    %653 = vmatprep.subr.bf16.mxu0 0
    %654 = vmatpush1.bf16.msra.mxu0 0
    %655 = vmatprep.subr.bf16.mxu0 0
    %656 = vmatpush1.bf16.msra.mxu0 0
    %657 = vmatprep.mubr.bf16.mxu0 0
    %658 = vmatmul.mubr.bf16.gmra.mrb[0].mxu0 %v620
    %v659 = vpop.f32.mrb[0].mxu0
    %v660 = vadd.f32 0.0, %v659
    %v661 = vpop.f32.mrb[0].mxu0
    %v662 = vpop.f32.mrb[0].mxu0
    %v663 = vpop.f32.mrb[0].mxu0
    %664 = vdwg.mxu0
    %v665 = vsel %vm339, %v278, 0
    %v668 = vsel %vm343, %v566, 0
    %670 = vmatprep.subr.bf16.mxu0 0
    %671 = vmatpush1.bf16.msra.mxu0 %v668
    %672 = vmatprep.subr.bf16.mxu0 0
    %673 = vmatpush1.bf16.msra.mxu0 0
    %674 = vmatprep.subr.bf16.mxu0 0
    %675 = vmatpush1.bf16.msra.mxu0 0
    %676 = vmatprep.subr.bf16.mxu0 0
    %677 = vmatpush1.bf16.msra.mxu0 0
    %678 = vmatprep.subr.bf16.mxu0 0
    %679 = vmatpush1.bf16.msra.mxu0 0
    %680 = vmatprep.subr.bf16.mxu0 0
    %681 = vmatpush1.bf16.msra.mxu0 0
    %682 = vmatprep.subr.bf16.mxu0 0
    %683 = vmatpush1.bf16.msra.mxu0 0
    %684 = vmatprep.subr.bf16.mxu0 0
    %685 = vmatpush1.bf16.msra.mxu0 0
    %686 = vmatprep.subr.bf16.mxu0 0
    %687 = vmatpush1.bf16.msra.mxu0 0
    %688 = vmatprep.subr.bf16.mxu0 0
    %689 = vmatpush1.bf16.msra.mxu0 0
    %690 = vmatprep.subr.bf16.mxu0 0
    %691 = vmatpush1.bf16.msra.mxu0 0
    %692 = vmatprep.subr.bf16.mxu0 0
    %693 = vmatpush1.bf16.msra.mxu0 0
    %694 = vmatprep.subr.bf16.mxu0 0
    %695 = vmatpush1.bf16.msra.mxu0 0
    %696 = vmatprep.subr.bf16.mxu0 0
    %697 = vmatpush1.bf16.msra.mxu0 0
    %698 = vmatprep.subr.bf16.mxu0 0
    %699 = vmatpush1.bf16.msra.mxu0 0
    %700 = vmatprep.subr.bf16.mxu0 0
    %701 = vmatpush1.bf16.msra.mxu0 0
    %702 = vmatprep.mubr.bf16.mxu0 0
    %703 = vmatmul.mubr.bf16.gmra.mrb[0].mxu0 %v665
    %v704 = vpop.f32.mrb[0].mxu0
    %v705 = vadd.f32 %v660, %v704
    %v706 = vpop.f32.mrb[0].mxu0
    %v707 = vpop.f32.mrb[0].mxu0
    %v708 = vpop.f32.mrb[0].mxu0
    %709 = vdwg.mxu0
    %v710 = vld [vmem:[#allocation22] sm:$0x1]
    %v712 = vlaneseq
    %v713 = vshrl.u32 %v712, 7
    %v714 = vsub.s32 0, %v713
    %v715 = vrot.slane %v710, %v714
    %v717 = vadd.f32 %v705, %v715
    %v718 = vld [vmem:[#allocation25] sm:$0x1]
    %v719 = vld [vmem:[#allocation27] sm:$0x1]
    %vm720 = vcmask 261120
    %v721 = vsel %vm720, %v564, 0.0
    %v722 = vsel %vm720, %v565, 0.0
    %v723 = vadd.f32 %v721, %v722
    %v724 = vrot.slane %v723, 4
    %v725 = vadd.f32 %v723, %v724
    %v726 = vrot.slane %v725, 2
    %v727 = vadd.f32 %v725, %v726
    %v728 = vrot.slane %v727, 1
    %v729 = vadd.f32 %v727, %v728
    %v730 = vmul.f32 %v564, %v564
    %v731 = vmul.f32 %v565, %v565
    %v732 = vsel %vm720, %v730, 0.0
    %v733 = vsel %vm720, %v731, 0.0
    %v734 = vadd.f32 %v732, %v733
    %v735 = vrot.slane %v734, 4
    %v736 = vadd.f32 %v734, %v735
    %v737 = vrot.slane %v736, 2
    %v738 = vadd.f32 %v736, %v737
    %v739 = vrot.slane %v738, 1
    %v740 = vadd.f32 %v738, %v739
    %v741 = vmul.f32 %v729, 0.0625
    %v742 = vmul.f32 %v740, 0.0625
    %v743 = vmul.f32 %v741, %v741
    %v744 = vsub.f32 %v742, %v743
    %v745 = vmax.f32 %v744, 0.0
    %v746 = vadd.f32 %v745, 1e-05
    %v747 = vrsqrt.pop %v746
    %v748 = vmul.f32 %v718, %v747
    %v749 = vmul.f32 %v741, %v748
    %v750 = vsub.f32 %v719, %v749
    %v752 = vlaneseq
    %v753 = vshrl.u32 %v752, 7
    %v754 = vsub.s32 0, %v753
    %v755 = vrot.slane %v748, %v754
    %v757 = vmul.f32 %v564, %v755
    %v758 = vmul.f32 %v565, %v755
    %v760 = vlaneseq
    %v761 = vshrl.u32 %v760, 7
    %v762 = vsub.s32 0, %v761
    %v763 = vrot.slane %v750, %v762
    %v765 = vadd.f32 %v757, %v763
    %v766 = vadd.f32 %v758, %v763
    %vm767 = vcmp.ge.f32.partialorder %v765, 0.0
    %vm768 = vcmp.ge.f32.partialorder %v766, 0.0
    %v769 = vmul.f32 %v765, 0.01
    %v770 = vmul.f32 %v766, 0.01
    %v771 = vsel %vm767, %v765, %v769
    %v772 = vsel %vm768, %v766, %v770
    %v773 = vld [vmem:[#allocation28] sm:$0x1]
    %v774 = vld [vmem:[#allocation30] sm:$0x1]
    %v775 = vsel %vm720, %v717, 0.0
    %v776 = vrot.slane %v775, 4
    %v777 = vadd.f32 %v775, %v776
    %v778 = vrot.slane %v777, 2
    %v779 = vadd.f32 %v777, %v778
    %v780 = vrot.slane %v779, 1
    %v781 = vadd.f32 %v779, %v780
    %v782 = vmul.f32 %v717, %v717
    %v783 = vsel %vm720, %v782, 0.0
    %v784 = vrot.slane %v783, 4
    %v785 = vadd.f32 %v783, %v784
    %v786 = vrot.slane %v785, 2
    %v787 = vadd.f32 %v785, %v786
    %v788 = vrot.slane %v787, 1
    %v789 = vadd.f32 %v787, %v788
    %v790 = vmul.f32 %v781, 0.125
    %v791 = vmul.f32 %v789, 0.125
    %v792 = vmul.f32 %v790, %v790
    %v793 = vsub.f32 %v791, %v792
    %v794 = vmax.f32 %v793, 0.0
    %v795 = vadd.f32 %v794, 1e-05
    %v796 = vrsqrt.pop %v795
    %v797 = vmul.f32 %v773, %v796
    %v798 = vmul.f32 %v790, %v797
    %v799 = vsub.f32 %v774, %v798
    %v801 = vlaneseq
    %v802 = vshrl.u32 %v801, 7
    %v803 = vsub.s32 0, %v802
    %v804 = vrot.slane %v797, %v803
    %v806 = vmul.f32 %v717, %v804
    %v808 = vlaneseq
    %v809 = vshrl.u32 %v808, 7
    %v810 = vsub.s32 0, %v809
    %v811 = vrot.slane %v799, %v810
    %v813 = vadd.f32 %v806, %v811
    %vm814 = vcmp.ge.f32.partialorder %v813, 0.0
    %v815 = vmul.f32 %v813, 0.01
    %v816 = vsel %vm814, %v813, %v815
    %v817 = vpack.c.bf16 %v772, %v771
    %v818 = vpack.c.bf16 %v816, %v816
    %v819 = vld [vmem:[%s17] sm:$0xf]
    %v820 = vld [vmem:[%s17 + $0x4] sm:$0xf]
    %v821 = vld [vmem:[%s17 + $0x8] sm:$0xf]
    %v822 = vld [vmem:[%s17 + $0xc] sm:$0xf]
    %v824 = vsel %vm292, %v818, 0
    %826 = vmatprep.subr.bf16.mxu0 0
    %827 = vmatpush1.bf16.msra.mxu0 %v824
    %828 = vmatprep.subr.bf16.mxu0 0
    %829 = vmatpush1.bf16.msra.mxu0 0
    %830 = vmatprep.subr.bf16.mxu0 0
    %831 = vmatpush1.bf16.msra.mxu0 0
    %832 = vmatprep.subr.bf16.mxu0 0
    %833 = vmatpush1.bf16.msra.mxu0 0
    %834 = vmatprep.subr.bf16.mxu0 0
    %835 = vmatpush1.bf16.msra.mxu0 0
    %836 = vmatprep.subr.bf16.mxu0 0
    %837 = vmatpush1.bf16.msra.mxu0 0
    %838 = vmatprep.subr.bf16.mxu0 0
    %839 = vmatpush1.bf16.msra.mxu0 0
    %840 = vmatprep.subr.bf16.mxu0 0
    %841 = vmatpush1.bf16.msra.mxu0 0
    %842 = vmatprep.subr.bf16.mxu0 0
    %843 = vmatpush1.bf16.msra.mxu0 0
    %844 = vmatprep.subr.bf16.mxu0 0
    %845 = vmatpush1.bf16.msra.mxu0 0
    %846 = vmatprep.subr.bf16.mxu0 0
    %847 = vmatpush1.bf16.msra.mxu0 0
    %848 = vmatprep.subr.bf16.mxu0 0
    %849 = vmatpush1.bf16.msra.mxu0 0
    %850 = vmatprep.subr.bf16.mxu0 0
    %851 = vmatpush1.bf16.msra.mxu0 0
    %852 = vmatprep.subr.bf16.mxu0 0
    %853 = vmatpush1.bf16.msra.mxu0 0
    %854 = vmatprep.subr.bf16.mxu0 0
    %855 = vmatpush1.bf16.msra.mxu0 0
    %856 = vmatprep.subr.bf16.mxu0 0
    %857 = vmatpush1.bf16.msra.mxu0 0
    %858 = vmatprep.mubr.bf16.mxu0 0
    %859 = vmatmul.mubr.bf16.gmra.mrb[0].mxu0 %v290
    %v860 = vpop.f32.mrb[0].mxu0
    %v861 = vadd.f32 0.0, %v860
    %v862 = vpop.f32.mrb[0].mxu0
    %v863 = vpop.f32.mrb[0].mxu0
    %v864 = vadd.f32 0.0, %v863
    %v865 = vpop.f32.mrb[0].mxu0
    %866 = vdwg.mxu0
    %v867 = vpack.c.bf16 %v864, %v861
    %v868 = vld [vmem:[%s19] sm:$0xf]
    %v869 = vld [vmem:[%s19 + $0x4] sm:$0xf]
    %v870 = vld [vmem:[%s19 + $0x8] sm:$0xf]
    %v871 = vld [vmem:[%s19 + $0xc] sm:$0xf]
    %v876 = vunpack.c.l.b16 %v868
    %v877 = vunpack.c.l.b16 %v869
    %v878 = vunpack.c.l.b16 %v870
    %v879 = vunpack.c.l.b16 %v871
    %v880 = vpack.c.b16 %v877, %v876
    %v881 = vpack.c.b16 %v879, %v878
    %v885 = vsel %vm720, %v867, 0
    %887 = vmatprep.subr.bf16.mxu0 0
    %888 = vmatpush1.bf16.msra.mxu0 %v880
    %889 = vmatprep.subr.bf16.mxu0 0
    %890 = vmatpush1.bf16.msra.mxu0 %v881
    %891 = vmatprep.subr.bf16.mxu0 0
    %892 = vmatpush1.bf16.msra.mxu0 0
    %893 = vmatprep.subr.bf16.mxu0 0
    %894 = vmatpush1.bf16.msra.mxu0 0
    %895 = vmatprep.subr.bf16.mxu0 0
    %896 = vmatpush1.bf16.msra.mxu0 0
    %897 = vmatprep.subr.bf16.mxu0 0
    %898 = vmatpush1.bf16.msra.mxu0 0
    %899 = vmatprep.subr.bf16.mxu0 0
    %900 = vmatpush1.bf16.msra.mxu0 0
    %901 = vmatprep.subr.bf16.mxu0 0
    %902 = vmatpush1.bf16.msra.mxu0 0
    %903 = vmatprep.subr.bf16.mxu0 0
    %904 = vmatpush1.bf16.msra.mxu0 0
    %905 = vmatprep.subr.bf16.mxu0 0
    %906 = vmatpush1.bf16.msra.mxu0 0
    %907 = vmatprep.subr.bf16.mxu0 0
    %908 = vmatpush1.bf16.msra.mxu0 0
    %909 = vmatprep.subr.bf16.mxu0 0
    %910 = vmatpush1.bf16.msra.mxu0 0
    %911 = vmatprep.subr.bf16.mxu0 0
    %912 = vmatpush1.bf16.msra.mxu0 0
    %913 = vmatprep.subr.bf16.mxu0 0
    %914 = vmatpush1.bf16.msra.mxu0 0
    %915 = vmatprep.subr.bf16.mxu0 0
    %916 = vmatpush1.bf16.msra.mxu0 0
    %917 = vmatprep.subr.bf16.mxu0 0
    %918 = vmatpush1.bf16.msra.mxu0 0
    %919 = vmatprep.mubr.bf16.mxu0 0
    %920 = vmatmul.mubr.bf16.gmra.mrb[0].mxu0 %v885
    %v921 = vpop.f32.mrb[0].mxu0
    %v922 = vadd.f32 0.0, %v921
    %v923 = vpop.f32.mrb[0].mxu0
    %v924 = vpop.f32.mrb[0].mxu0
    %v925 = vadd.f32 0.0, %v924
    %v926 = vpop.f32.mrb[0].mxu0
    %927 = vdwg.mxu0
    %v932 = vunpack.c.l.b16 %v819
    %v933 = vunpack.c.l.b16 %v820
    %v934 = vunpack.c.l.b16 %v821
    %v935 = vunpack.c.l.b16 %v822
    %v936 = vpack.c.b16 %v933, %v932
    %v937 = vpack.c.b16 %v935, %v934
    %v941 = vsel %vm720, %v817, 0
    %943 = vmatprep.subr.bf16.mxu0 0
    %944 = vmatpush1.bf16.msra.mxu0 %v936
    %945 = vmatprep.subr.bf16.mxu0 0
    %946 = vmatpush1.bf16.msra.mxu0 %v937
    %947 = vmatprep.subr.bf16.mxu0 0
    %948 = vmatpush1.bf16.msra.mxu0 0
    %949 = vmatprep.subr.bf16.mxu0 0
    %950 = vmatpush1.bf16.msra.mxu0 0
    %951 = vmatprep.subr.bf16.mxu0 0
    %952 = vmatpush1.bf16.msra.mxu0 0
    %953 = vmatprep.subr.bf16.mxu0 0
    %954 = vmatpush1.bf16.msra.mxu0 0
    %955 = vmatprep.subr.bf16.mxu0 0
    %956 = vmatpush1.bf16.msra.mxu0 0
    %957 = vmatprep.subr.bf16.mxu0 0
    %958 = vmatpush1.bf16.msra.mxu0 0
    %959 = vmatprep.subr.bf16.mxu0 0
    %960 = vmatpush1.bf16.msra.mxu0 0
    %961 = vmatprep.subr.bf16.mxu0 0
    %962 = vmatpush1.bf16.msra.mxu0 0
    %963 = vmatprep.subr.bf16.mxu0 0
    %964 = vmatpush1.bf16.msra.mxu0 0
    %965 = vmatprep.subr.bf16.mxu0 0
    %966 = vmatpush1.bf16.msra.mxu0 0
    %967 = vmatprep.subr.bf16.mxu0 0
    %968 = vmatpush1.bf16.msra.mxu0 0
    %969 = vmatprep.subr.bf16.mxu0 0
    %970 = vmatpush1.bf16.msra.mxu0 0
    %971 = vmatprep.subr.bf16.mxu0 0
    %972 = vmatpush1.bf16.msra.mxu0 0
    %973 = vmatprep.subr.bf16.mxu0 0
    %974 = vmatpush1.bf16.msra.mxu0 0
    %975 = vmatprep.mubr.bf16.mxu0 0
    %976 = vmatmul.mubr.bf16.gmra.mrb[0].mxu0 %v941
    %v977 = vpop.f32.mrb[0].mxu0
    %v978 = vadd.f32 %v922, %v977
    %v979 = vpop.f32.mrb[0].mxu0
    %v980 = vpop.f32.mrb[0].mxu0
    %v981 = vadd.f32 %v925, %v980
    %v982 = vpop.f32.mrb[0].mxu0
    %983 = vdwg.mxu0
    %984 = vmatprep.subr.bf16.mxu0 0
    %985 = vmatpush1.bf16.msra.mxu0 %v817
    %986 = vmatprep.subr.bf16.mxu0 0
    %987 = vmatpush1.bf16.msra.mxu0 0
    %988 = vmatprep.subr.bf16.mxu0 0
    %989 = vmatpush1.bf16.msra.mxu0 0
    %990 = vmatprep.subr.bf16.mxu0 0
    %991 = vmatpush1.bf16.msra.mxu0 0
    %992 = vmatprep.subr.bf16.mxu0 0
    %993 = vmatpush1.bf16.msra.mxu0 0
    %994 = vmatprep.subr.bf16.mxu0 0
    %995 = vmatpush1.bf16.msra.mxu0 0
    %996 = vmatprep.subr.bf16.mxu0 0
    %997 = vmatpush1.bf16.msra.mxu0 0
    %998 = vmatprep.subr.bf16.mxu0 0
    %999 = vmatpush1.bf16.msra.mxu0 0
    %1000 = vmatprep.subr.bf16.mxu0 0
    %1001 = vmatpush1.bf16.msra.mxu0 0
    %1002 = vmatprep.subr.bf16.mxu0 0
    %1003 = vmatpush1.bf16.msra.mxu0 0
    %1004 = vmatprep.subr.bf16.mxu0 0
    %1005 = vmatpush1.bf16.msra.mxu0 0
    %1006 = vmatprep.subr.bf16.mxu0 0
    %1007 = vmatpush1.bf16.msra.mxu0 0
    %1008 = vmatprep.subr.bf16.mxu0 0
    %1009 = vmatpush1.bf16.msra.mxu0 0
    %1010 = vmatprep.subr.bf16.mxu0 0
    %1011 = vmatpush1.bf16.msra.mxu0 0
    %1012 = vmatprep.subr.bf16.mxu0 0
    %1013 = vmatpush1.bf16.msra.mxu0 0
    %1014 = vmatprep.subr.bf16.mxu0 0
    %1015 = vmatpush1.bf16.msra.mxu0 0
    %1016 = vmatprep.mubr.bf16.mxu0 0
    %1017 = vmatmul.mubr.bf16.gmra.mrb[0].mxu0 %v457
    %v1018 = vpop.f32.mrb[0].mxu0
    %v1019 = vadd.f32 0.0, %v1018
    %v1020 = vpop.f32.mrb[0].mxu0
    %v1021 = vpop.f32.mrb[0].mxu0
    %v1022 = vadd.f32 0.0, %v1021
    %v1023 = vpop.f32.mrb[0].mxu0
    %1024 = vdwg.mxu0
    %v1025 = vpack.c.bf16 %v1022, %v1019
    %v1026 = vld [vmem:[%s20] sm:$0xf]
    %v1027 = vld [vmem:[%s20 + $0x4] sm:$0xf]
    %v1028 = vld [vmem:[%s20 + $0x8] sm:$0xf]
    %v1029 = vld [vmem:[%s20 + $0xc] sm:$0xf]
    %v1034 = vunpack.c.l.b16 %v1026
    %v1035 = vunpack.c.l.b16 %v1027
    %v1036 = vunpack.c.l.b16 %v1028
    %v1037 = vunpack.c.l.b16 %v1029
    %v1038 = vpack.c.b16 %v1035, %v1034
    %v1039 = vpack.c.b16 %v1037, %v1036
    %v1043 = vsel %vm720, %v1025, 0
    %1045 = vmatprep.subr.bf16.mxu0 0
    %1046 = vmatpush1.bf16.msra.mxu0 %v1038
    %1047 = vmatprep.subr.bf16.mxu0 0
    %1048 = vmatpush1.bf16.msra.mxu0 %v1039
    %1049 = vmatprep.subr.bf16.mxu0 0
    %1050 = vmatpush1.bf16.msra.mxu0 0
    %1051 = vmatprep.subr.bf16.mxu0 0
    %1052 = vmatpush1.bf16.msra.mxu0 0
    %1053 = vmatprep.subr.bf16.mxu0 0
    %1054 = vmatpush1.bf16.msra.mxu0 0
    %1055 = vmatprep.subr.bf16.mxu0 0
    %1056 = vmatpush1.bf16.msra.mxu0 0
    %1057 = vmatprep.subr.bf16.mxu0 0
    %1058 = vmatpush1.bf16.msra.mxu0 0
    %1059 = vmatprep.subr.bf16.mxu0 0
    %1060 = vmatpush1.bf16.msra.mxu0 0
    %1061 = vmatprep.subr.bf16.mxu0 0
    %1062 = vmatpush1.bf16.msra.mxu0 0
    %1063 = vmatprep.subr.bf16.mxu0 0
    %1064 = vmatpush1.bf16.msra.mxu0 0
    %1065 = vmatprep.subr.bf16.mxu0 0
    %1066 = vmatpush1.bf16.msra.mxu0 0
    %1067 = vmatprep.subr.bf16.mxu0 0
    %1068 = vmatpush1.bf16.msra.mxu0 0
    %1069 = vmatprep.subr.bf16.mxu0 0
    %1070 = vmatpush1.bf16.msra.mxu0 0
    %1071 = vmatprep.subr.bf16.mxu0 0
    %1072 = vmatpush1.bf16.msra.mxu0 0
    %1073 = vmatprep.subr.bf16.mxu0 0
    %1074 = vmatpush1.bf16.msra.mxu0 0
    %1075 = vmatprep.subr.bf16.mxu0 0
    %1076 = vmatpush1.bf16.msra.mxu0 0
    %1077 = vmatprep.mubr.bf16.mxu0 0
    %1078 = vmatmul.mubr.bf16.gmra.mrb[0].mxu0 %v1043
    %v1079 = vpop.f32.mrb[0].mxu0
    %v1080 = vadd.f32 0.0, %v1079
    %v1081 = vpop.f32.mrb[0].mxu0
    %v1082 = vpop.f32.mrb[0].mxu0
    %v1083 = vadd.f32 0.0, %v1082
    %v1084 = vpop.f32.mrb[0].mxu0
    %1085 = vdwg.mxu0
    %v1086 = vadd.f32 %v978, %v1080
    %v1087 = vadd.f32 %v981, %v1083
    %v1088 = vld [vmem:[#allocation31] sm:$0x1]
    %v1090 = vlaneseq
    %v1091 = vshrl.u32 %v1090, 7
    %v1092 = vsub.s32 0, %v1091
    %v1093 = vrot.slane %v1088, %v1092
    %v1095 = vadd.f32 %v1086, %v1093
    %v1096 = vadd.f32 %v1087, %v1093
    %v1097 = vld [vmem:[%s21] sm:$0xf]
    %v1098 = vld [vmem:[%s21 + $0x4] sm:$0xf]
    %v1099 = vld [vmem:[%s21 + $0x8] sm:$0xf]
    %v1100 = vld [vmem:[%s21 + $0xc] sm:$0xf]
    %1101 = vmatprep.subr.bf16.mxu0 0
    %1102 = vmatpush1.bf16.msra.mxu0 %v817
    %1103 = vmatprep.subr.bf16.mxu0 0
    %1104 = vmatpush1.bf16.msra.mxu0 0
    %1105 = vmatprep.subr.bf16.mxu0 0
    %1106 = vmatpush1.bf16.msra.mxu0 0
    %1107 = vmatprep.subr.bf16.mxu0 0
    %1108 = vmatpush1.bf16.msra.mxu0 0
    %1109 = vmatprep.subr.bf16.mxu0 0
    %1110 = vmatpush1.bf16.msra.mxu0 0
    %1111 = vmatprep.subr.bf16.mxu0 0
    %1112 = vmatpush1.bf16.msra.mxu0 0
    %1113 = vmatprep.subr.bf16.mxu0 0
    %1114 = vmatpush1.bf16.msra.mxu0 0
    %1115 = vmatprep.subr.bf16.mxu0 0
    %1116 = vmatpush1.bf16.msra.mxu0 0
    %1117 = vmatprep.subr.bf16.mxu0 0
    %1118 = vmatpush1.bf16.msra.mxu0 0
    %1119 = vmatprep.subr.bf16.mxu0 0
    %1120 = vmatpush1.bf16.msra.mxu0 0
    %1121 = vmatprep.subr.bf16.mxu0 0
    %1122 = vmatpush1.bf16.msra.mxu0 0
    %1123 = vmatprep.subr.bf16.mxu0 0
    %1124 = vmatpush1.bf16.msra.mxu0 0
    %1125 = vmatprep.subr.bf16.mxu0 0
    %1126 = vmatpush1.bf16.msra.mxu0 0
    %1127 = vmatprep.subr.bf16.mxu0 0
    %1128 = vmatpush1.bf16.msra.mxu0 0
    %1129 = vmatprep.subr.bf16.mxu0 0
    %1130 = vmatpush1.bf16.msra.mxu0 0
    %1131 = vmatprep.subr.bf16.mxu0 0
    %1132 = vmatpush1.bf16.msra.mxu0 0
    %1133 = vmatprep.mubr.bf16.mxu0 0
    %1134 = vmatmul.mubr.bf16.gmra.mrb[0].mxu0 %v569
    %v1135 = vpop.f32.mrb[0].mxu0
    %v1136 = vadd.f32 0.0, %v1135
    %v1137 = vpop.f32.mrb[0].mxu0
    %v1138 = vpop.f32.mrb[0].mxu0
    %v1139 = vpop.f32.mrb[0].mxu0
    %1140 = vdwg.mxu0
    %v1141 = vpack.c.bf16 %v1136, %v1136
    %v1142 = vld [vmem:[%s23] sm:$0xf]
    %v1143 = vld [vmem:[%s23 + $0x4] sm:$0xf]
    %v1144 = vld [vmem:[%s23 + $0x8] sm:$0xf]
    %v1145 = vld [vmem:[%s23 + $0xc] sm:$0xf]
    %v1150 = vunpack.c.l.b16 %v1142
    %v1151 = vunpack.c.l.b16 %v1143
    %v1152 = vunpack.c.l.b16 %v1144
    %v1153 = vunpack.c.l.b16 %v1145
    %v1154 = vpack.c.b16 %v1151, %v1150
    %v1155 = vpack.c.b16 %v1153, %v1152
    %v1159 = vsel %vm720, %v1141, 0
    %1161 = vmatprep.subr.bf16.mxu0 0
    %1162 = vmatpush1.bf16.msra.mxu0 %v1154
    %1163 = vmatprep.subr.bf16.mxu0 0
    %1164 = vmatpush1.bf16.msra.mxu0 %v1155
    %1165 = vmatprep.subr.bf16.mxu0 0
    %1166 = vmatpush1.bf16.msra.mxu0 0
    %1167 = vmatprep.subr.bf16.mxu0 0
    %1168 = vmatpush1.bf16.msra.mxu0 0
    %1169 = vmatprep.subr.bf16.mxu0 0
    %1170 = vmatpush1.bf16.msra.mxu0 0
    %1171 = vmatprep.subr.bf16.mxu0 0
    %1172 = vmatpush1.bf16.msra.mxu0 0
    %1173 = vmatprep.subr.bf16.mxu0 0
    %1174 = vmatpush1.bf16.msra.mxu0 0
    %1175 = vmatprep.subr.bf16.mxu0 0
    %1176 = vmatpush1.bf16.msra.mxu0 0
    %1177 = vmatprep.subr.bf16.mxu0 0
    %1178 = vmatpush1.bf16.msra.mxu0 0
    %1179 = vmatprep.subr.bf16.mxu0 0
    %1180 = vmatpush1.bf16.msra.mxu0 0
    %1181 = vmatprep.subr.bf16.mxu0 0
    %1182 = vmatpush1.bf16.msra.mxu0 0
    %1183 = vmatprep.subr.bf16.mxu0 0
    %1184 = vmatpush1.bf16.msra.mxu0 0
    %1185 = vmatprep.subr.bf16.mxu0 0
    %1186 = vmatpush1.bf16.msra.mxu0 0
    %1187 = vmatprep.subr.bf16.mxu0 0
    %1188 = vmatpush1.bf16.msra.mxu0 0
    %1189 = vmatprep.subr.bf16.mxu0 0
    %1190 = vmatpush1.bf16.msra.mxu0 0
    %1191 = vmatprep.subr.bf16.mxu0 0
    %1192 = vmatpush1.bf16.msra.mxu0 0
    %1193 = vmatprep.mubr.bf16.mxu0 0
    %1194 = vmatmul.mubr.bf16.gmra.mrb[0].mxu0 %v1159
    %v1195 = vpop.f32.mrb[0].mxu0
    %v1196 = vadd.f32 0.0, %v1195
    %v1197 = vpop.f32.mrb[0].mxu0
    %v1198 = vpop.f32.mrb[0].mxu0
    %v1199 = vpop.f32.mrb[0].mxu0
    %1200 = vdwg.mxu0
    %v1205 = vunpack.c.l.b16 %v1097
    %v1206 = vunpack.c.l.b16 %v1098
    %v1207 = vunpack.c.l.b16 %v1099
    %v1208 = vunpack.c.l.b16 %v1100
    %v1209 = vpack.c.b16 %v1206, %v1205
    %v1210 = vpack.c.b16 %v1208, %v1207
    %v1213 = vsel %vm720, %v818, 0
    %1215 = vmatprep.subr.bf16.mxu0 0
    %1216 = vmatpush1.bf16.msra.mxu0 %v1209
    %1217 = vmatprep.subr.bf16.mxu0 0
    %1218 = vmatpush1.bf16.msra.mxu0 %v1210
    %1219 = vmatprep.subr.bf16.mxu0 0
    %1220 = vmatpush1.bf16.msra.mxu0 0
    %1221 = vmatprep.subr.bf16.mxu0 0
    %1222 = vmatpush1.bf16.msra.mxu0 0
    %1223 = vmatprep.subr.bf16.mxu0 0
    %1224 = vmatpush1.bf16.msra.mxu0 0
    %1225 = vmatprep.subr.bf16.mxu0 0
    %1226 = vmatpush1.bf16.msra.mxu0 0
    %1227 = vmatprep.subr.bf16.mxu0 0
    %1228 = vmatpush1.bf16.msra.mxu0 0
    %1229 = vmatprep.subr.bf16.mxu0 0
    %1230 = vmatpush1.bf16.msra.mxu0 0
    %1231 = vmatprep.subr.bf16.mxu0 0
    %1232 = vmatpush1.bf16.msra.mxu0 0
    %1233 = vmatprep.subr.bf16.mxu0 0
    %1234 = vmatpush1.bf16.msra.mxu0 0
    %1235 = vmatprep.subr.bf16.mxu0 0
    %1236 = vmatpush1.bf16.msra.mxu0 0
    %1237 = vmatprep.subr.bf16.mxu0 0
    %1238 = vmatpush1.bf16.msra.mxu0 0
    %1239 = vmatprep.subr.bf16.mxu0 0
    %1240 = vmatpush1.bf16.msra.mxu0 0
    %1241 = vmatprep.subr.bf16.mxu0 0
    %1242 = vmatpush1.bf16.msra.mxu0 0
    %1243 = vmatprep.subr.bf16.mxu0 0
    %1244 = vmatpush1.bf16.msra.mxu0 0
    %1245 = vmatprep.subr.bf16.mxu0 0
    %1246 = vmatpush1.bf16.msra.mxu0 0
    %1247 = vmatprep.mubr.bf16.mxu0 0
    %1248 = vmatmul.mubr.bf16.gmra.mrb[0].mxu0 %v1213
    %v1249 = vpop.f32.mrb[0].mxu0
    %v1250 = vadd.f32 %v1196, %v1249
    %v1251 = vpop.f32.mrb[0].mxu0
    %v1252 = vpop.f32.mrb[0].mxu0
    %v1253 = vpop.f32.mrb[0].mxu0
    %1254 = vdwg.mxu0
    %v1255 = vld [vmem:[%s22] sm:$0x1]
    %v1257 = vlaneseq
    %v1258 = vshrl.u32 %v1257, 7
    %v1259 = vsub.s32 0, %v1258
    %v1260 = vrot.slane %v1255, %v1259
    %v1262 = vadd.f32 %v1250, %v1260
    %1263 = vst.msk [vmem:[#allocation2] sm:$0xff] %vm720, %v1095
    %1264 = vst.msk [vmem:[#allocation2 + $0x8] sm:$0xff] %vm720, %v1096
    %1265 = vst.msk [vmem:[#allocation3] sm:$0xff] %vm720, %v1262
    %1266 = vst.msk [vmem:[#allocation4] sm:$0xff] %vm720, 0.0
    %1267 = vst.msk [vmem:[#allocation4 + $0x8] sm:$0xff] %vm720, 0.0
    %1268 = vst.msk [vmem:[#allocation4 + $0x10] sm:$0xff] %vm720, 0.0
    %1269 = vst.msk [vmem:[#allocation4 + $0x18] sm:$0xff] %vm720, 0.0
    %1270 = vst.msk [vmem:[#allocation4 + $0x20] sm:$0xff] %vm720, 0.0
    %1271 = vst.msk [vmem:[#allocation4 + $0x28] sm:$0xff] %vm720, 0.0
    %1272 = vst.msk [vmem:[#allocation4 + $0x30] sm:$0xff] %vm720, 0.0
    %1273 = vst.msk [vmem:[#allocation4 + $0x38] sm:$0xff] %vm720, 0.0
    %1274 = vst.msk [vmem:[#allocation4 + $0x40] sm:$0xff] %vm720, 0.0
    %1275 = vst.msk [vmem:[#allocation4 + $0x48] sm:$0xff] %vm720, 0.0
    %1276 = vst.msk [vmem:[#allocation4 + $0x50] sm:$0xff] %vm720, 0.0
    %1277 = vst.msk [vmem:[#allocation4 + $0x58] sm:$0xff] %vm720, 0.0
    %1278 = vst.msk [vmem:[#allocation4 + $0x60] sm:$0xff] %vm720, 0.0
    %1279 = vst.msk [vmem:[#allocation4 + $0x68] sm:$0xff] %vm720, 0.0
    %1280 = vst.msk [vmem:[#allocation4 + $0x70] sm:$0xff] %vm720, 0.0
    %1281 = vst.msk [vmem:[#allocation4 + $0x78] sm:$0xff] %vm720, 0.0
    %s1282 = sld [smem:[#allocation6]]
    %s1283 = sld [smem:[#allocation6 + $0xa]]
    %s1284 = scalar_lea.vmem [#allocation2], %s1282
    %v1285 = vld [vmem:[%s1284] sm:$0x1]
    %s1286 = scalar_lea.vmem [#allocation3], %s1283
    %v1287 = vld [vmem:[%s1286] sm:$0x1]
    %v1288 = vmul.f32 %v1285, %v1287
    %vm1289 = vcmask 253952
    %1290 = vst.msk [vmem:[#allocation4] sm:$0x1] %vm1289, %v1288
    %s1291 = sld [smem:[#allocation6 + $0x1]]
    %s1292 = sld [smem:[#allocation6 + $0xb]]
    %s1293 = scalar_lea.vmem [#allocation2], %s1291
    %v1294 = vld [vmem:[%s1293] sm:$0x1]
    %s1295 = scalar_lea.vmem [#allocation3], %s1292
    %v1296 = vld [vmem:[%s1295] sm:$0x1]
    %v1297 = vmul.f32 %v1294, %v1296
    %1298 = vst.msk [vmem:[#allocation4 + $0x1] sm:$0x1] %vm1289, %v1297
    %s1299 = sld [smem:[#allocation6 + $0x2]]
    %s1300 = sld [smem:[#allocation6 + $0xc]]
    %s1301 = scalar_lea.vmem [#allocation2], %s1299
    %v1302 = vld [vmem:[%s1301] sm:$0x1]
    %s1303 = scalar_lea.vmem [#allocation3], %s1300
    %v1304 = vld [vmem:[%s1303] sm:$0x1]
    %v1305 = vmul.f32 %v1302, %v1304
    %1306 = vst.msk [vmem:[#allocation4 + $0x2] sm:$0x1] %vm1289, %v1305
    %s1307 = sld [smem:[#allocation6 + $0x3]]
    %s1308 = sld [smem:[#allocation6 + $0xd]]
    %s1309 = scalar_lea.vmem [#allocation2], %s1307
    %v1310 = vld [vmem:[%s1309] sm:$0x1]
    %s1311 = scalar_lea.vmem [#allocation3], %s1308
    %v1312 = vld [vmem:[%s1311] sm:$0x1]
    %v1313 = vmul.f32 %v1310, %v1312
    %1314 = vst.msk [vmem:[#allocation4 + $0x3] sm:$0x1] %vm1289, %v1313
    %s1315 = sld [smem:[#allocation6 + $0x4]]
    %s1316 = sld [smem:[#allocation6 + $0xe]]
    %s1317 = scalar_lea.vmem [#allocation2], %s1315
    %v1318 = vld [vmem:[%s1317] sm:$0x1]
    %s1319 = scalar_lea.vmem [#allocation3], %s1316
    %v1320 = vld [vmem:[%s1319] sm:$0x1]
    %v1321 = vmul.f32 %v1318, %v1320
    %1322 = vst.msk [vmem:[#allocation4 + $0x4] sm:$0x1] %vm1289, %v1321
    %s1323 = sld [smem:[#allocation6 + $0x5]]
    %s1324 = sld [smem:[#allocation6 + $0xf]]
    %s1325 = scalar_lea.vmem [#allocation2], %s1323
    %v1326 = vld [vmem:[%s1325] sm:$0x1]
    %s1327 = scalar_lea.vmem [#allocation3], %s1324
    %v1328 = vld [vmem:[%s1327] sm:$0x1]
    %v1329 = vmul.f32 %v1326, %v1328
    %1330 = vst.msk [vmem:[#allocation4 + $0x5] sm:$0x1] %vm1289, %v1329
    %s1331 = sld [smem:[#allocation6 + $0x6]]
    %s1332 = sld [smem:[#allocation6 + $0x10]]
    %s1333 = scalar_lea.vmem [#allocation2], %s1331
    %v1334 = vld [vmem:[%s1333] sm:$0x1]
    %s1335 = scalar_lea.vmem [#allocation3], %s1332
    %v1336 = vld [vmem:[%s1335] sm:$0x1]
    %v1337 = vmul.f32 %v1334, %v1336
    %1338 = vst.msk [vmem:[#allocation4 + $0x6] sm:$0x1] %vm1289, %v1337
    %s1339 = sld [smem:[#allocation6 + $0x7]]
    %s1340 = sld [smem:[#allocation6 + $0x11]]
    %s1341 = scalar_lea.vmem [#allocation2], %s1339
    %v1342 = vld [vmem:[%s1341] sm:$0x1]
    %s1343 = scalar_lea.vmem [#allocation3], %s1340
    %v1344 = vld [vmem:[%s1343] sm:$0x1]
    %v1345 = vmul.f32 %v1342, %v1344
    %1346 = vst.msk [vmem:[#allocation4 + $0x7] sm:$0x1] %vm1289, %v1345
    %s1347 = sld [smem:[#allocation6 + $0x8]]
    %s1348 = sld [smem:[#allocation6 + $0x12]]
    %s1349 = scalar_lea.vmem [#allocation2], %s1347
    %v1350 = vld [vmem:[%s1349] sm:$0x1]
    %s1351 = scalar_lea.vmem [#allocation3], %s1348
    %v1352 = vld [vmem:[%s1351] sm:$0x1]
    %v1353 = vmul.f32 %v1350, %v1352
    %1354 = vst.msk [vmem:[#allocation4 + $0x8] sm:$0x1] %vm1289, %v1353
    %s1355 = sld [smem:[#allocation6 + $0x9]]
    %s1356 = sld [smem:[#allocation6 + $0x13]]
    %s1357 = scalar_lea.vmem [#allocation2], %s1355
    %v1358 = vld [vmem:[%s1357] sm:$0x1]
    %s1359 = scalar_lea.vmem [#allocation3], %s1356
    %v1360 = vld [vmem:[%s1359] sm:$0x1]
    %v1361 = vmul.f32 %v1358, %v1360
    %1362 = vst.msk [vmem:[#allocation4 + $0x9] sm:$0x1] %vm1289, %v1361
    %s1363 = sld [smem:[#allocation6 + $0x14]]
    %s1364 = sld [smem:[#allocation6 + $0x1e]]
    %s1365 = scalar_lea.vmem [#allocation3], %s1363
    %v1366 = vld [vmem:[%s1365] sm:$0x1]
    %s1367 = scalar_lea.vmem [#allocation2], %s1364
    %v1368 = vld [vmem:[%s1367] sm:$0x1]
    %v1369 = vmul.f32 %v1366, %v1368
    %1370 = vst.msk [vmem:[#allocation4 + $0xa] sm:$0x1] %vm1289, %v1369
    %s1371 = sld [smem:[#allocation6 + $0x15]]
    %s1372 = sld [smem:[#allocation6 + $0x1f]]
    %s1373 = scalar_lea.vmem [#allocation3], %s1371
    %v1374 = vld [vmem:[%s1373] sm:$0x1]
    %s1375 = scalar_lea.vmem [#allocation2], %s1372
    %v1376 = vld [vmem:[%s1375] sm:$0x1]
    %v1377 = vmul.f32 %v1374, %v1376
    %1378 = vst.msk [vmem:[#allocation4 + $0xb] sm:$0x1] %vm1289, %v1377
    %s1379 = sld [smem:[#allocation6 + $0x16]]
    %s1380 = sld [smem:[#allocation6 + $0x20]]
    %s1381 = scalar_lea.vmem [#allocation3], %s1379
    %v1382 = vld [vmem:[%s1381] sm:$0x1]
    %s1383 = scalar_lea.vmem [#allocation2], %s1380
    %v1384 = vld [vmem:[%s1383] sm:$0x1]
    %v1385 = vmul.f32 %v1382, %v1384
    %1386 = vst.msk [vmem:[#allocation4 + $0xc] sm:$0x1] %vm1289, %v1385
    %s1387 = sld [smem:[#allocation6 + $0x17]]
    %s1388 = sld [smem:[#allocation6 + $0x21]]
    %s1389 = scalar_lea.vmem [#allocation3], %s1387
    %v1390 = vld [vmem:[%s1389] sm:$0x1]
    %s1391 = scalar_lea.vmem [#allocation2], %s1388
    %v1392 = vld [vmem:[%s1391] sm:$0x1]
    %v1393 = vmul.f32 %v1390, %v1392
    %1394 = vst.msk [vmem:[#allocation4 + $0xd] sm:$0x1] %vm1289, %v1393
    %s1395 = sld [smem:[#allocation6 + $0x18]]
    %s1396 = sld [smem:[#allocation6 + $0x22]]
    %s1397 = scalar_lea.vmem [#allocation3], %s1395
    %v1398 = vld [vmem:[%s1397] sm:$0x1]
    %s1399 = scalar_lea.vmem [#allocation2], %s1396
    %v1400 = vld [vmem:[%s1399] sm:$0x1]
    %v1401 = vmul.f32 %v1398, %v1400
    %1402 = vst.msk [vmem:[#allocation4 + $0xe] sm:$0x1] %vm1289, %v1401
    %s1403 = sld [smem:[#allocation6 + $0x19]]
    %s1404 = sld [smem:[#allocation6 + $0x23]]
    %s1405 = scalar_lea.vmem [#allocation3], %s1403
    %v1406 = vld [vmem:[%s1405] sm:$0x1]
    %s1407 = scalar_lea.vmem [#allocation2], %s1404
    %v1408 = vld [vmem:[%s1407] sm:$0x1]
    %v1409 = vmul.f32 %v1406, %v1408
    %1410 = vst.msk [vmem:[#allocation4 + $0xf] sm:$0x1] %vm1289, %v1409
    %s1411 = sld [smem:[#allocation6 + $0x1a]]
    %s1412 = sld [smem:[#allocation6 + $0x24]]
    %s1413 = scalar_lea.vmem [#allocation3], %s1411
    %v1414 = vld [vmem:[%s1413] sm:$0x1]
    %s1415 = scalar_lea.vmem [#allocation2], %s1412
    %v1416 = vld [vmem:[%s1415] sm:$0x1]
    %v1417 = vmul.f32 %v1414, %v1416
    %1418 = vst.msk [vmem:[#allocation4 + $0x10] sm:$0x1] %vm1289, %v1417
    %s1419 = sld [smem:[#allocation6 + $0x1b]]
    %s1420 = sld [smem:[#allocation6 + $0x25]]
    %s1421 = scalar_lea.vmem [#allocation3], %s1419
    %v1422 = vld [vmem:[%s1421] sm:$0x1]
    %s1423 = scalar_lea.vmem [#allocation2], %s1420
    %v1424 = vld [vmem:[%s1423] sm:$0x1]
    %v1425 = vmul.f32 %v1422, %v1424
    %1426 = vst.msk [vmem:[#allocation4 + $0x11] sm:$0x1] %vm1289, %v1425
    %s1427 = sld [smem:[#allocation6 + $0x1c]]
    %s1428 = sld [smem:[#allocation6 + $0x26]]
    %s1429 = scalar_lea.vmem [#allocation3], %s1427
    %v1430 = vld [vmem:[%s1429] sm:$0x1]
    %s1431 = scalar_lea.vmem [#allocation2], %s1428
    %v1432 = vld [vmem:[%s1431] sm:$0x1]
    %v1433 = vmul.f32 %v1430, %v1432
    %1434 = vst.msk [vmem:[#allocation4 + $0x12] sm:$0x1] %vm1289, %v1433
    %s1435 = sld [smem:[#allocation6 + $0x1d]]
    %s1436 = sld [smem:[#allocation6 + $0x27]]
    %s1437 = scalar_lea.vmem [#allocation3], %s1435
    %v1438 = vld [vmem:[%s1437] sm:$0x1]
    %s1439 = scalar_lea.vmem [#allocation2], %s1436
    %v1440 = vld [vmem:[%s1439] sm:$0x1]
    %v1441 = vmul.f32 %v1438, %v1440
    %1442 = vst.msk [vmem:[#allocation4 + $0x13] sm:$0x1] %vm1289, %v1441
    %v1443 = vld [vmem:[#allocation4] sm:$0xff]
    %v1444 = vld [vmem:[#allocation4 + $0x8] sm:$0xff]
    %v1445 = vld [vmem:[#allocation4 + $0x10] sm:$0xff]
    %v1446 = vld [vmem:[#allocation4 + $0x18] sm:$0xff]
    %v1447 = vld [vmem:[#allocation4 + $0x20] sm:$0xff]
    %v1448 = vld [vmem:[#allocation4 + $0x28] sm:$0xff]
    %v1449 = vld [vmem:[#allocation4 + $0x30] sm:$0xff]
    %v1450 = vld [vmem:[#allocation4 + $0x38] sm:$0xff]
    %v1451 = vld [vmem:[#allocation4 + $0x40] sm:$0xff]
    %v1452 = vld [vmem:[#allocation4 + $0x48] sm:$0xff]
    %v1453 = vld [vmem:[#allocation4 + $0x50] sm:$0xff]
    %v1454 = vld [vmem:[#allocation4 + $0x58] sm:$0xff]
    %v1455 = vld [vmem:[#allocation4 + $0x60] sm:$0xff]
    %v1456 = vld [vmem:[#allocation4 + $0x68] sm:$0xff]
    %v1457 = vld [vmem:[#allocation4 + $0x70] sm:$0xff]
    %v1458 = vld [vmem:[#allocation4 + $0x78] sm:$0xff]
    %v1459 = vsel %vm720, %v1443, 0.0
    %1460 = vadd.xlane.f32.xlu0 %v1459
    %v1461 = vpop.xlane.xlu0 %1460
    %v1462 = vsel %vm720, %v1444, 0.0
    %1463 = vadd.xlane.f32.xlu0 %v1462
    %v1464 = vpop.xlane.xlu0 %1463
    %v1465 = vsel %vm720, %v1445, 0.0
    %1466 = vadd.xlane.f32.xlu0 %v1465
    %v1467 = vpop.xlane.xlu0 %1466
    %v1468 = vsel %vm720, %v1446, 0.0
    %1469 = vadd.xlane.f32.xlu0 %v1468
    %v1470 = vpop.xlane.xlu0 %1469
    %v1471 = vsel %vm720, %v1447, 0.0
    %1472 = vadd.xlane.f32.xlu0 %v1471
    %v1473 = vpop.xlane.xlu0 %1472
    %v1474 = vsel %vm720, %v1448, 0.0
    %1475 = vadd.xlane.f32.xlu0 %v1474
    %v1476 = vpop.xlane.xlu0 %1475
    %v1477 = vsel %vm720, %v1449, 0.0
    %1478 = vadd.xlane.f32.xlu0 %v1477
    %v1479 = vpop.xlane.xlu0 %1478
    %v1480 = vsel %vm720, %v1450, 0.0
    %1481 = vadd.xlane.f32.xlu0 %v1480
    %v1482 = vpop.xlane.xlu0 %1481
    %v1483 = vsel %vm720, %v1451, 0.0
    %1484 = vadd.xlane.f32.xlu0 %v1483
    %v1485 = vpop.xlane.xlu0 %1484
    %v1486 = vsel %vm720, %v1452, 0.0
    %1487 = vadd.xlane.f32.xlu0 %v1486
    %v1488 = vpop.xlane.xlu0 %1487
    %v1489 = vsel %vm720, %v1453, 0.0
    %1490 = vadd.xlane.f32.xlu0 %v1489
    %v1491 = vpop.xlane.xlu0 %1490
    %v1492 = vsel %vm720, %v1454, 0.0
    %1493 = vadd.xlane.f32.xlu0 %v1492
    %v1494 = vpop.xlane.xlu0 %1493
    %v1495 = vsel %vm720, %v1455, 0.0
    %1496 = vadd.xlane.f32.xlu0 %v1495
    %v1497 = vpop.xlane.xlu0 %1496
    %v1498 = vsel %vm720, %v1456, 0.0
    %1499 = vadd.xlane.f32.xlu0 %v1498
    %v1500 = vpop.xlane.xlu0 %1499
    %v1501 = vsel %vm720, %v1457, 0.0
    %1502 = vadd.xlane.f32.xlu0 %v1501
    %v1503 = vpop.xlane.xlu0 %1502
    %v1504 = vsel %vm720, %v1458, 0.0
    %1505 = vadd.xlane.f32.xlu0 %v1504
    %v1506 = vpop.xlane.xlu0 %1505
    %v1523 = vlaneseq
    %v1524 = vand.u32 %v1523, 127
    %v1525 = vlaneseq
    %v1526 = vshrl.u32 %v1525, 7
    %v1527 = vsub.s32 %v1524, %v1526
    %v1528 = vrot.slane %v1461, %v1527
    %v1529 = vadd.s32 %v1524, 4294967288
    %v1530 = vlaneseq
    %v1531 = vshrl.u32 %v1530, 7
    %v1532 = vsub.s32 %v1529, %v1531
    %v1533 = vrot.slane %v1464, %v1532
    %vm1534 = vcmask 130112
    %v1535 = vsel %vm1534, %v1533, %v1528
    %v1536 = vadd.s32 %v1524, 4294967280
    %v1537 = vlaneseq
    %v1538 = vshrl.u32 %v1537, 7
    %v1539 = vsub.s32 %v1536, %v1538
    %v1540 = vrot.slane %v1467, %v1539
    %vm1541 = vcmask 195712
    %v1542 = vsel %vm1541, %v1540, %v1535
    %v1543 = vadd.s32 %v1524, 4294967272
    %v1544 = vlaneseq
    %v1545 = vshrl.u32 %v1544, 7
    %v1546 = vsub.s32 %v1543, %v1545
    %v1547 = vrot.slane %v1470, %v1546
    %vm1548 = vcmask 261312
    %v1549 = vsel %vm1548, %v1547, %v1542
    %v1550 = vadd.s32 %v1524, 4294967264
    %v1551 = vlaneseq
    %v1552 = vshrl.u32 %v1551, 7
    %v1553 = vsub.s32 %v1550, %v1552
    %v1554 = vrot.slane %v1473, %v1553
    %vm1555 = vcmask 326912
    %v1556 = vsel %vm1555, %v1554, %v1549
    %v1557 = vadd.s32 %v1524, 4294967256
    %v1558 = vlaneseq
    %v1559 = vshrl.u32 %v1558, 7
    %v1560 = vsub.s32 %v1557, %v1559
    %v1561 = vrot.slane %v1476, %v1560
    %vm1562 = vcmask 392512
    %v1563 = vsel %vm1562, %v1561, %v1556
    %v1564 = vadd.s32 %v1524, 4294967248
    %v1565 = vlaneseq
    %v1566 = vshrl.u32 %v1565, 7
    %v1567 = vsub.s32 %v1564, %v1566
    %v1568 = vrot.slane %v1479, %v1567
    %vm1569 = vcmask 458112
    %v1570 = vsel %vm1569, %v1568, %v1563
    %v1571 = vadd.s32 %v1524, 4294967240
    %v1572 = vlaneseq
    %v1573 = vshrl.u32 %v1572, 7
    %v1574 = vsub.s32 %v1571, %v1573
    %v1575 = vrot.slane %v1482, %v1574
    %vm1576 = vcmask 523712
    %v1577 = vsel %vm1576, %v1575, %v1570
    %v1578 = vadd.s32 %v1524, 4294967232
    %v1579 = vlaneseq
    %v1580 = vshrl.u32 %v1579, 7
    %v1581 = vsub.s32 %v1578, %v1580
    %v1582 = vrot.slane %v1485, %v1581
    %vm1583 = vcmask 589312
    %v1584 = vsel %vm1583, %v1582, %v1577
    %v1585 = vadd.s32 %v1524, 4294967224
    %v1586 = vlaneseq
    %v1587 = vshrl.u32 %v1586, 7
    %v1588 = vsub.s32 %v1585, %v1587
    %v1589 = vrot.slane %v1488, %v1588
    %vm1590 = vcmask 654912
    %v1591 = vsel %vm1590, %v1589, %v1584
    %v1592 = vadd.s32 %v1524, 4294967216
    %v1593 = vlaneseq
    %v1594 = vshrl.u32 %v1593, 7
    %v1595 = vsub.s32 %v1592, %v1594
    %v1596 = vrot.slane %v1491, %v1595
    %vm1597 = vcmask 720512
    %v1598 = vsel %vm1597, %v1596, %v1591
    %v1599 = vadd.s32 %v1524, 4294967208
    %v1600 = vlaneseq
    %v1601 = vshrl.u32 %v1600, 7
    %v1602 = vsub.s32 %v1599, %v1601
    %v1603 = vrot.slane %v1494, %v1602
    %vm1604 = vcmask 786112
    %v1605 = vsel %vm1604, %v1603, %v1598
    %v1606 = vadd.s32 %v1524, 4294967200
    %v1607 = vlaneseq
    %v1608 = vshrl.u32 %v1607, 7
    %v1609 = vsub.s32 %v1606, %v1608
    %v1610 = vrot.slane %v1497, %v1609
    %vm1611 = vcmask 851712
    %v1612 = vsel %vm1611, %v1610, %v1605
    %v1613 = vadd.s32 %v1524, 4294967192
    %v1614 = vlaneseq
    %v1615 = vshrl.u32 %v1614, 7
    %v1616 = vsub.s32 %v1613, %v1615
    %v1617 = vrot.slane %v1500, %v1616
    %vm1618 = vcmask 917312
    %v1619 = vsel %vm1618, %v1617, %v1612
    %v1620 = vadd.s32 %v1524, 4294967184
    %v1621 = vlaneseq
    %v1622 = vshrl.u32 %v1621, 7
    %v1623 = vsub.s32 %v1620, %v1622
    %v1624 = vrot.slane %v1503, %v1623
    %vm1625 = vcmask 982912
    %v1626 = vsel %vm1625, %v1624, %v1619
    %v1627 = vadd.s32 %v1524, 4294967176
    %v1628 = vlaneseq
    %v1629 = vshrl.u32 %v1628, 7
    %v1630 = vsub.s32 %v1627, %v1629
    %v1631 = vrot.slane %v1506, %v1630
    %vm1632 = vcmask 1048512
    %v1633 = vsel %vm1632, %v1631, %v1626
    %1635 = vst [vmem:[#allocation33] sm:$0x1] %v1633
    // Predicated region
    $region158: #{tpu_custom_call.1} parent=1 // pred_check
      _
    $region159: #{tpu_custom_call.1} parent=1 // pred_check_branch
      %1637 = sbr.rel (0) target = $region161
    $region160: #{tpu_custom_call.1} parent=1 // pred_region
      %s1639 = ssub.s32 16, 16
      %1640 = vsyncadd [#allocation9], %s1639
      %s1642 = sshll.u32 [#allocation33], 4
      %s1643 = int_to_ptr.vmem [resolvable:$true] %s1642
      %1645 = dma.vmem_to_hbm [thread:$0]  %s1643, 16, %s24, [#allocation9]
    $region161: #{tpu_custom_call.1} parent=1 // pred_fallthru
      _
    // Predicated region
    $region162: #{tpu_custom_call.1} parent=1 // pred_check
      _
    $region163: #{tpu_custom_call.1} parent=1 // pred_check_branch
      %1647 = sbr.rel (0) target = $region165
    $region164: #{tpu_custom_call.1} parent=1 // pred_region
      %1648 = dma.done [#allocation9], 16
    $region165: #{tpu_custom_call.1} parent=1 // pred_fallthru
      _
    %1649 = vsyncpa [#allocation8], 1
    %1650 = vsyncpa [#allocation11], 1
    %1651 = vsyncpa [#allocation14], 1
    %1652 = vsyncpa [#allocation17], 1
    %1653 = vsyncpa [#allocation20], 1
    %1654 = vsyncpa [#allocation23], 1
    %1655 = vsyncpa [#allocation26], 1
    %1656 = vsyncpa [#allocation29], 1
    %1657 = vsyncpa [#allocation32], 1
    %1658 = vsyncpa [#allocation9], 1

</llo_original>
